<compile_context>
chip_gen: v6e
topology: v6e:2x2x1
jax: 0.10.0
libtpu: 0.0.40
codegen_flags: <defaults>
</compile_context>

<pallas_src>
import jax
import jax.numpy as jnp
from jax import lax
from jax.experimental import pallas as pl
from jax.experimental.pallas import tpu as pltpu


# ------------------------------------------------------------------ fused kernel
def _head_kernel(x_ref, wq_ref, wkv_ref, o_ref, k_ref, v_ref):
    # x_ref:   (1, T, C)   bf16  (block index constant in the q-tile axis ->
    #                             DMA'd once per batch element)
    # wq_ref:  (C, hs)     bf16  (1/sqrt(hs) already folded in)
    # wkv_ref: (C, 2*hs)   bf16  (columns = [Wk | Wv])
    # o_ref:   (1, Tq, hs) f32
    # k_ref, v_ref: (T, hs) bf16 VMEM scratch (filled once per batch element)
    i = pl.program_id(1)
    tq = o_ref.shape[1]
    hs = o_ref.shape[2]
    T = x_ref.shape[1]

    # K/V projection: one lane-full (T,C)@(C,2*hs) matmul, only at i == 0.
    @pl.when(i == 0)
    def _():
        kv = jnp.dot(x_ref[0], wkv_ref[...],
                     preferred_element_type=jnp.float32)            # (T, 2*hs)
        k_ref[...] = kv[:, :hs].astype(k_ref.dtype)
        v_ref[...] = kv[:, hs:].astype(v_ref.dtype)

    # Q projection for this query tile only (scale pre-folded into Wq).
    row0 = pl.multiple_of(i * tq, tq)
    x_tile = x_ref[0, pl.ds(row0, tq), :]                           # (Tq, C)
    q = jnp.dot(x_tile, wq_ref[...],
                preferred_element_type=jnp.float32)                 # (Tq, hs)

    # scores = q @ K^T : contract hs on both operands (no explicit transpose).
    scores = lax.dot_general(
        q.astype(jnp.bfloat16), k_ref[...],
        dimension_numbers=(((1,), (1,)), ((), ())),
        preferred_element_type=jnp.float32)                         # (Tq, T)

    # Causal mask with global row indices (diagonal kept -> no all -inf rows).
    row = row0 + lax.broadcasted_iota(jnp.int32, (tq, T), 0)
    col = lax.broadcasted_iota(jnp.int32, (tq, T), 1)
    scores = jnp.where(row >= col, scores, -jnp.inf)

    # Numerically-stable softmax in f32; normalization deferred past the PV
    # matmul so the broadcast-multiply is (Tq, hs) instead of (Tq, T).
    m = jnp.max(scores, axis=-1, keepdims=True)
    e = jnp.exp(scores - m)
    denom = jnp.sum(e, axis=-1, keepdims=True)

    # TODO(synk): dropout on the attention weights skipped (eval mode).
    out = jnp.dot(e.astype(jnp.bfloat16), v_ref[...],
                  preferred_element_type=jnp.float32)               # (Tq, hs)
    out = out * pl.reciprocal(denom, approx=True)
    o_ref[0] = out.astype(o_ref.dtype)


def head_forward(x, wq, wk, wv, *, tq=128):
    """One attention head.

    x:  (B, T, C) float32
    wq, wk, wv: (C, hs) float32  (already transposed so y = x @ W)
    returns: (B, T, hs) float32
    """
    B, T, C = x.shape
    hs = wq.shape[1]
    tq = min(tq, T)
    assert T % tq == 0, "T must be divisible by the query tile size"

    # Fold the attention scale into Wq, fuse Wk|Wv into one lane-dense slab,
    # and cast all MXU inputs to bf16 (halves DMA bytes, native MXU rate).
    scale = float(hs) ** -0.5
    wq_scaled = (wq * scale).astype(jnp.bfloat16)                   # (C, hs)
    wkv = jnp.concatenate([wk, wv], axis=1).astype(jnp.bfloat16)    # (C, 2*hs)
    x_bf16 = x.astype(jnp.bfloat16)

    return pl.pallas_call(
        _head_kernel,
        out_shape=jax.ShapeDtypeStruct((B, T, hs), jnp.float32),
        grid_spec=pltpu.PrefetchScalarGridSpec(
            num_scalar_prefetch=0,
            grid=(B, T // tq),
            in_specs=[
                # x: constant in the tile axis -> resident per batch element.
                pl.BlockSpec((1, T, C), lambda b, i: (b, 0, 0)),
                pl.BlockSpec((C, hs), lambda b, i: (0, 0)),
                pl.BlockSpec((C, 2 * hs), lambda b, i: (0, 0)),
            ],
            out_specs=pl.BlockSpec((1, tq, hs), lambda b, i: (b, i, 0)),
            scratch_shapes=[
                pltpu.VMEM((T, hs), jnp.bfloat16),   # K
                pltpu.VMEM((T, hs), jnp.bfloat16),   # V
            ],
        ),
        compiler_params=pltpu.CompilerParams(
            # q-tile axis must stay sequential: K/V scratch is filled at i==0.
            dimension_semantics=("parallel", "arbitrary")),
    )(x_bf16, wq_scaled, wkv)


# ------------------------------------------------------------------ pure-JAX reference
def head_ref(x, wq, wk, wv):
    B, T, C = x.shape
    hs = wq.shape[1]
    q = x @ wq
    k = x @ wk
    v = x @ wv
    wei = jnp.einsum('btd,bsd->bts', q, k) * (hs ** -0.5)
    mask = jnp.tril(jnp.ones((T, T), bool))
    wei = jnp.where(mask, wei, -jnp.inf)
    wei = jax.nn.softmax(wei, axis=-1)
    return jnp.einsum('bts,bsd->btd', wei, v)


if __name__ == "__main__":
    # Shapes consistent with the module: C = n_embd = 384, T <= block_size=512.
    # head_size = 128 -> lane-dense output; T = 256 -> grid (B, 2) q-tiles.
    n_embd = 384
    head_size = 128
    B, T = 2, 256

    key = jax.random.PRNGKey(0)
    kx, kq, kk, kv = jax.random.split(key, 4)

    x = jax.random.normal(kx, (B, T, n_embd), jnp.float32)
    # nn.Linear(n_embd, head_size, bias=False) weights, stored transposed so
    # y = x @ W  (W: (C, hs)).
    wq = jax.random.normal(kq, (n_embd, head_size), jnp.float32) * 0.02
    wk = jax.random.normal(kk, (n_embd, head_size), jnp.float32) * 0.02
    wv = jax.random.normal(kv, (n_embd, head_size), jnp.float32) * 0.02

    out = head_forward(x, wq, wk, wv)
    out = jax.block_until_ready(out)

    ref = head_ref(x, wq, wk, wv)
    assert out.shape == (B, T, head_size)
    # bf16 matmul inputs + approx reciprocal -> loosened tolerance vs. f32 ref.
    max_err = float(jnp.max(jnp.abs(out - ref)))
    assert max_err < 2e-2, f"mismatch vs reference (max abs err {max_err})"

    print("KERNEL_OK")
</pallas_src>

<mosaic_0001>
module attributes {stable_mosaic.version = 11 : i64} {
  func.func @_head_kernel(%arg0: i32, %arg1: i32, %arg2: memref<1x256x384xbf16, #tpu.memory_space<vmem>>, %arg3: memref<384x128xbf16, #tpu.memory_space<vmem>>, %arg4: memref<384x256xbf16, #tpu.memory_space<vmem>>, %arg5: memref<1x128x128xf32, #tpu.memory_space<vmem>>, %arg6: memref<256x128xbf16, #tpu.memory_space<vmem>>, %arg7: memref<256x128xbf16, #tpu.memory_space<vmem>>) attributes {dimension_semantics = [#tpu.dimension_semantics<parallel>, #tpu.dimension_semantics<arbitrary>], iteration_bounds = array<i64: 2, 2>, scalar_prefetch = 0 : i64, scratch_operands = 2 : i64, tpu.core_type = #tpu.core_type<tc>, window_params = [{transform_indices = @transform_0, window_bounds = array<i64: 1, 256, 384>}, {pipeline_mode = #tpu.pipeline_mode<synchronous>, transform_indices = @transform_1, window_bounds = array<i64: 384, 128>}, {pipeline_mode = #tpu.pipeline_mode<synchronous>, transform_indices = @transform_2, window_bounds = array<i64: 384, 256>}, {transform_indices = @transform_3, window_bounds = array<i64: 1, 128, 128>}]} {
    %c0_i32 = arith.constant 0 : i32
    %0 = arith.cmpi eq, %arg1, %c0_i32 : i32
    %1 = arith.extui %0 : i1 to i32
    %c0_i32_0 = arith.constant 0 : i32
    %2 = arith.cmpi ne, %1, %c0_i32_0 : i32
    scf.if %2 {
      %c0_16 = arith.constant 0 : index
      %c0_17 = arith.constant 0 : index
      %c0_18 = arith.constant 0 : index
      %36 = vector.load %arg2[%c0_16, %c0_17, %c0_18] : memref<1x256x384xbf16, #tpu.memory_space<vmem>>, vector<1x256x384xbf16>
      %37 = vector.shape_cast %36 : vector<1x256x384xbf16> to vector<256x384xbf16>
      %c0_19 = arith.constant 0 : index
      %c0_20 = arith.constant 0 : index
      %38 = vector.load %arg4[%c0_19, %c0_20] : memref<384x256xbf16, #tpu.memory_space<vmem>>, vector<384x256xbf16>
      %cst_21 = arith.constant dense<0.000000e+00> : vector<256x256xf32>
      %39 = tpu.matmul %37, %38, %cst_21 {dimension_numbers = #tpu.dot_dimension_numbers<[1], [0], [0], [1], [0, 0, 1, 1], [], []>} : vector<256x384xbf16>, vector<384x256xbf16>, vector<256x256xf32> -> vector<256x256xf32>
      %40 = vector.extract_strided_slice %39 {offsets = [0, 0], sizes = [256, 128], strides = [1, 1]} : vector<256x256xf32> to vector<256x128xf32>
      %41 = arith.truncf %40 : vector<256x128xf32> to vector<256x128xbf16>
      %c0_22 = arith.constant 0 : index
      %c0_23 = arith.constant 0 : index
      %42 = vector.load %arg6[%c0_22, %c0_23] : memref<256x128xbf16, #tpu.memory_space<vmem>>, vector<256x128xbf16>
      tpu.vector_store %arg6[%c0_22, %c0_23], %41 {strides = array<i32>} : memref<256x128xbf16, #tpu.memory_space<vmem>>, vector<256x128xbf16>,
      %43 = vector.extract_strided_slice %39 {offsets = [0, 128], sizes = [256, 128], strides = [1, 1]} : vector<256x256xf32> to vector<256x128xf32>
      %44 = arith.truncf %43 : vector<256x128xf32> to vector<256x128xbf16>
      %c0_24 = arith.constant 0 : index
      %c0_25 = arith.constant 0 : index
      %45 = vector.load %arg7[%c0_24, %c0_25] : memref<256x128xbf16, #tpu.memory_space<vmem>>, vector<256x128xbf16>
      tpu.vector_store %arg7[%c0_24, %c0_25], %44 {strides = array<i32>} : memref<256x128xbf16, #tpu.memory_space<vmem>>, vector<256x128xbf16>,
    } else {
    }
    %c128_i32 = arith.constant 128 : i32
    %3 = arith.muli %arg1, %c128_i32 : i32
    %4 = tpu.assume_multiple %3, 128 : i32
    %c0 = arith.constant 0 : index
    %5 = arith.index_cast %4 : i32 to index
    %c0_1 = arith.constant 0 : index
    %6 = vector.load %arg2[%c0, %5, %c0_1] : memref<1x256x384xbf16, #tpu.memory_space<vmem>>, vector<1x128x384xbf16>
    %7 = vector.shape_cast %6 : vector<1x128x384xbf16> to vector<128x384xbf16>
    %c0_2 = arith.constant 0 : index
    %c0_3 = arith.constant 0 : index
    %8 = vector.load %arg3[%c0_2, %c0_3] : memref<384x128xbf16, #tpu.memory_space<vmem>>, vector<384x128xbf16>
    %cst = arith.constant dense<0.000000e+00> : vector<128x128xf32>
    %9 = tpu.matmul %7, %8, %cst {dimension_numbers = #tpu.dot_dimension_numbers<[1], [0], [0], [1], [0, 0, 1, 1], [], []>} : vector<128x384xbf16>, vector<384x128xbf16>, vector<128x128xf32> -> vector<128x128xf32>
    %10 = arith.truncf %9 : vector<128x128xf32> to vector<128x128xbf16>
    %c0_4 = arith.constant 0 : index
    %c0_5 = arith.constant 0 : index
    %11 = vector.load %arg6[%c0_4, %c0_5] : memref<256x128xbf16, #tpu.memory_space<vmem>>, vector<256x128xbf16>
    %cst_6 = arith.constant dense<0.000000e+00> : vector<128x256xf32>
    %12 = tpu.matmul %10, %11, %cst_6 {dimension_numbers = #tpu.dot_dimension_numbers<[1], [1], [0], [0], [0, 0, 1, 0], [], []>} : vector<128x128xbf16>, vector<256x128xbf16>, vector<128x256xf32> -> vector<128x256xf32>
    %13 = tpu.iota {dimensions = array<i32: 0>} : vector<128x256xi32>
    %14 = vector.broadcast %4 : i32 to vector<128x256xi32>
    %15 = arith.addi %14, %13 : vector<128x256xi32>
    %16 = tpu.iota {dimensions = array<i32: 1>} : vector<128x256xi32>
    %17 = arith.cmpi sge, %15, %16 : vector<128x256xi32>
    %cst_7 = arith.constant 0xFF800000 : f32
    %18 = vector.broadcast %cst_7 : f32 to vector<128x256xf32>
    %19 = arith.select %17, %12, %18 : vector<128x256xi1>, vector<128x256xf32>
    %cst_8 = arith.constant dense<0xFF800000> : vector<128xf32>
    %20 = vector.multi_reduction <maximumf>, %19, %cst_8 [1] : vector<128x256xf32> to vector<128xf32>
    %21 = vector.shape_cast %20 : vector<128xf32> to vector<128x1xf32>
    %22 = vector.broadcast %21 : vector<128x1xf32> to vector<128x256xf32>
    %23 = arith.subf %19, %22 : vector<128x256xf32>
    %24 = math.exp %23 : vector<128x256xf32>
    %cst_9 = arith.constant dense<0.000000e+00> : vector<128xf32>
    %25 = vector.multi_reduction <add>, %24, %cst_9 [1] : vector<128x256xf32> to vector<128xf32>
    %26 = vector.shape_cast %25 : vector<128xf32> to vector<128x1xf32>
    %27 = arith.truncf %24 : vector<128x256xf32> to vector<128x256xbf16>
    %c0_10 = arith.constant 0 : index
    %c0_11 = arith.constant 0 : index
    %28 = vector.load %arg7[%c0_10, %c0_11] : memref<256x128xbf16, #tpu.memory_space<vmem>>, vector<256x128xbf16>
    %cst_12 = arith.constant dense<0.000000e+00> : vector<128x128xf32>
    %29 = tpu.matmul %27, %28, %cst_12 {dimension_numbers = #tpu.dot_dimension_numbers<[1], [0], [0], [1], [0, 0, 1, 1], [], []>} : vector<128x256xbf16>, vector<256x128xbf16>, vector<128x128xf32> -> vector<128x128xf32>
    %30 = tpu.reciprocal %26 {approx = true} : vector<128x1xf32> -> vector<128x1xf32>
    %31 = vector.broadcast %30 : vector<128x1xf32> to vector<128x128xf32>
    %32 = arith.mulf %29, %31 : vector<128x128xf32>
    %c0_13 = arith.constant 0 : index
    %c0_14 = arith.constant 0 : index
    %c0_15 = arith.constant 0 : index
    %33 = vector.load %arg5[%c0_13, %c0_14, %c0_15] : memref<1x128x128xf32, #tpu.memory_space<vmem>>, vector<1x128x128xf32>
    %34 = vector.shape_cast %33 : vector<1x128x128xf32> to vector<128x128xf32>
    %35 = vector.shape_cast %32 : vector<128x128xf32> to vector<1x128x128xf32>
    tpu.vector_store %arg5[%c0_13, %c0_14, %c0_15], %35 {strides = array<i32>} : memref<1x128x128xf32, #tpu.memory_space<vmem>>, vector<1x128x128xf32>,
    return
  }
  func.func @transform_0(%arg0: i32, %arg1: i32) -> (i32, i32, i32) {
    %c0_i32 = arith.constant 0 : i32
    %c0_i32_0 = arith.constant 0 : i32
    %c0_i32_1 = arith.constant 0 : i32
    return %arg0, %c0_i32, %c0_i32_0 : i32, i32, i32
  }
  func.func @transform_1(%arg0: i32, %arg1: i32) -> (i32, i32) {
    %c0_i32 = arith.constant 0 : i32
    %c0_i32_0 = arith.constant 0 : i32
    %c0_i32_1 = arith.constant 0 : i32
    return %c0_i32, %c0_i32_0 : i32, i32
  }
  func.func @transform_2(%arg0: i32, %arg1: i32) -> (i32, i32) {
    %c0_i32 = arith.constant 0 : i32
    %c0_i32_0 = arith.constant 0 : i32
    %c0_i32_1 = arith.constant 0 : i32
    return %c0_i32, %c0_i32_0 : i32, i32
  }
  func.func @transform_3(%arg0: i32, %arg1: i32) -> (i32, i32, i32) {
    %c0_i32 = arith.constant 0 : i32
    %c0_i32_0 = arith.constant 0 : i32
    return %arg0, %arg1, %c0_i32 : i32, i32, i32
  }
}

</mosaic_0001>

<llo_original>
// kernel: tpu_custom_call.1
$region0: #{tpu_custom_call.1}
  #allocation0 [shape = 'u32[]', space=smem, size = 0x4, offset = 0x4, fixed_abs, tag = 'smem constant byte address 0x4 - core index']
  #allocation1 [shape = 'u32[144,128]{1,0:T(1,128)}', space=vmem, size = 0x12000, scoped, tag = 'internal scratch']
  #allocation2 [shape = 'bf16[256,128]{1,0:T(8,128)(2,1)}', space=vmem, size = 0x10000, scoped, tag = 'scratch operand']
  #allocation3 [shape = 'bf16[256,128]{1,0:T(8,128)(2,1)}', space=vmem, size = 0x10000, scoped, tag = 'scratch operand']
  %s0 = inlined_call_operand.hbm [shape: bf16[2,256,384], index: 0, kind: input, shape index: {}]
  %s1 = inlined_call_operand.hbm [shape: bf16[384,128], index: 1, kind: input, shape index: {}]
  %s2 = inlined_call_operand.hbm [shape: bf16[384,256], index: 2, kind: input, shape index: {}]
  %s3 = inlined_call_operand.hbm [shape: f32[2,256,128], index: 3, kind: output, shape index: {}]
  %s4 = sld [smem:[#allocation0]]
  $region61: #{tpu_custom_call.1} parent=0
    _
  %s6 = ssub.s32 1, %s4
  %s7 = scalar_select 0, %s6, %s4
  $region1: #{tpu_custom_call.1} parent=0
    #allocation4 [shape = 'u8[393216]{0}', space=vmem, size = 0x60000, scoped, tag = 'input window, operand 0']
    #allocation5 [shape = 's32[2]{0}', space=sflag, size = 0x8, scoped, tag = 'scoped memory for tpu_custom_call.1']
    #allocation6 [shape = 's32[2]{0}', space=sflag, size = 0x8, scoped, tag = 'scoped memory for tpu_custom_call.1']
    #allocation7 [shape = 'u8[98304]{0}', space=vmem, size = 0x18000, scoped, tag = 'input window, operand 1, single buffered']
    #allocation8 [shape = 's32[1]{0}', space=sflag, size = 0x4, scoped, tag = 'scoped memory for tpu_custom_call.1']
    #allocation9 [shape = 'u8[196608]{0}', space=vmem, size = 0x30000, scoped, tag = 'input window, operand 2, single buffered']
    #allocation10 [shape = 'u8[131072]{0}', space=vmem, size = 0x20000, scoped, tag = 'output window, operand 0']
    %8 = vsyncpa [#allocation5], 0
    %s9 = scalar_lea.sflag [#allocation5], 1
    %10 = vsyncpa %s9, 0
    %11 = vsyncpa [#allocation8], 0
    %12 = vsyncpa [#allocation6], 0
    %s13 = scalar_lea.sflag [#allocation6], 1
    %14 = vsyncpa %s13, 0
    loop: start=0, step=1, limit=6
    $region2: #{tpu_custom_call.1} parent=1 // loop_pre_header
      _
    $region3: #{tpu_custom_call.1} parent=1 // loop_header
      %s16 = sphi 0, %s20
      %p17 = scmp.ge.s32.totalorder %s16, 6
      %s23 = sphi 0, %s35
      %s24 = sphi 0, %s31
      %s25 = sphi 0, %s23
      %s26 = sphi 0, %s24
      %s27 = sphi 0, %s25
      %s28 = sphi 0, %s26
      %s38 = sphi 0, %s40
      %s41 = sphi 0, %s38
      %s42 = sphi 0, %s41
      %s58 = sphi 0, %s42
      %s62 = sphi 0, %s62
      %s64 = sphi 0, %s62
      %s65 = sphi 0, %s64
      %s79 = sphi 0, %s65
      %s83 = sphi 0, %s83
      %s85 = sphi 0, %s83
      %s86 = sphi 0, %s85
      %s100 = sphi 0, %s86
      %s108 = sphi 0, %s110
      %s111 = sphi 0, %s108
      %s112 = sphi 0, %s111
      %s128 = sphi 0, %s112
    $region4: #{tpu_custom_call.1} parent=1 // loop_header_branch
      %19 = sbr.rel (%p17) target = $region8
    $region5: #{tpu_custom_call.1} parent=1 // loop_body
      %s21 = ssub.s32 %s16, 1
      %s22 = ssub.s32 %s16, 2
      %s29 = sadd.s32 1, %s24
      %p30 = scmp.ge.s32.totalorder %s29, 2
      %s31 = scalar_select %p30, 0, %s29
      %s32 = sadd.s32 1, %s23
      %s33 = scalar_select %p30, %s32, %s23
      %p34 = scmp.ge.s32.totalorder %s33, 2
      %s35 = scalar_select %p34, 0, %s33
      %s36 = ssub.s32 %s23, %s35
      %p37 = scmp.eq.s32.totalorder %s36, 0
      %s39 = sadd.s32 %s38, 1
      %s40 = scalar_select %p37, %s38, %s39
      %p43 = pneg %p37
      %p44 = scmp.eq.s32.totalorder %s16, 3
      %p45 = por %p43, %p44
      %p46 = scmp.ne.s32.totalorder %s38, %s41
      %p47 = scmp.eq.s32.totalorder %s16, 0
      %p48 = por %p46, %p47
      %p49 = scmp.ne.s32.totalorder %s38, %s41
      %p50 = scmp.eq.s32.totalorder %s21, 3
      %p51 = por %p49, %p50
      %p52 = scmp.ne.s32.totalorder %s41, %s42
      %p53 = scmp.eq.s32.totalorder %s21, 0
      %p54 = por %p52, %p53
      %p55 = scmp.ne.s32.totalorder %s41, %s42
      %p56 = scmp.eq.s32.totalorder %s22, 3
      %p57 = por %p55, %p56
      %p59 = scmp.ne.s32.totalorder %s42, %s58
      %p60 = scmp.eq.s32.totalorder %s22, 0
      %p61 = por %p59, %p60
      %s63 = sadd.s32 %s62, 1
      %p66 = scmp.eq.s32.totalorder %s16, 3
      %p67 = scmp.ne.s32.totalorder %s62, %s64
      %p68 = scmp.eq.s32.totalorder %s16, 0
      %p69 = por %p67, %p68
      %p70 = scmp.ne.s32.totalorder %s62, %s64
      %p71 = scmp.eq.s32.totalorder %s21, 3
      %p72 = por %p70, %p71
      %p73 = scmp.ne.s32.totalorder %s64, %s65
      %p74 = scmp.eq.s32.totalorder %s21, 0
      %p75 = por %p73, %p74
      %p76 = scmp.ne.s32.totalorder %s64, %s65
      %p77 = scmp.eq.s32.totalorder %s22, 3
      %p78 = por %p76, %p77
      %p80 = scmp.ne.s32.totalorder %s65, %s79
      %p81 = scmp.eq.s32.totalorder %s22, 0
      %p82 = por %p80, %p81
      %s84 = sadd.s32 %s83, 1
      %p87 = scmp.eq.s32.totalorder %s16, 3
      %p88 = scmp.ne.s32.totalorder %s83, %s85
      %p89 = scmp.eq.s32.totalorder %s16, 0
      %p90 = por %p88, %p89
      %p91 = scmp.ne.s32.totalorder %s83, %s85
      %p92 = scmp.eq.s32.totalorder %s21, 3
      %p93 = por %p91, %p92
      %p94 = scmp.ne.s32.totalorder %s85, %s86
      %p95 = scmp.eq.s32.totalorder %s21, 0
      %p96 = por %p94, %p95
      %p97 = scmp.ne.s32.totalorder %s85, %s86
      %p98 = scmp.eq.s32.totalorder %s22, 3
      %p99 = por %p97, %p98
      %p101 = scmp.ne.s32.totalorder %s86, %s100
      %p102 = scmp.eq.s32.totalorder %s22, 0
      %p103 = por %p101, %p102
      %s104 = ssub.s32 %s23, %s35
      %s105 = ssub.s32 %s24, %s31
      %s106 = sor.u32 %s104, %s105
      %p107 = scmp.eq.s32.totalorder %s106, 0
      %s109 = sadd.s32 %s108, 1
      %s110 = scalar_select %p107, %s108, %s109
      %p113 = pneg %p107
      %p114 = scmp.eq.s32.totalorder %s16, 3
      %p115 = por %p113, %p114
      %p116 = scmp.ne.s32.totalorder %s108, %s111
      %p117 = scmp.eq.s32.totalorder %s16, 0
      %p118 = por %p116, %p117
      %p119 = scmp.ne.s32.totalorder %s108, %s111
      %p120 = scmp.eq.s32.totalorder %s21, 3
      %p121 = por %p119, %p120
      %p122 = scmp.ne.s32.totalorder %s111, %s112
      %p123 = scmp.eq.s32.totalorder %s21, 0
      %p124 = por %p122, %p123
      %p125 = scmp.ne.s32.totalorder %s111, %s112
      %p126 = scmp.eq.s32.totalorder %s22, 3
      %p127 = por %p125, %p126
      %p129 = scmp.ne.s32.totalorder %s112, %s128
      %p130 = scmp.eq.s32.totalorder %s22, 0
      %p131 = por %p129, %p130
      %p132 = scmp.le.s32.totalorder 1, %s16
      %p133 = scmp.lt.s32.totalorder %s16, 5
      %p134 = pnand %p132, %p133
      %p135 = pneg %p134
      // Predicated region
      $region9: #{tpu_custom_call.1} parent=5 // pred_check
        _
      $region10: #{tpu_custom_call.1} parent=5 // pred_check_branch
        %137 = sbr.rel (%p134) target = $region12
      $region11: #{tpu_custom_call.1} parent=5 // pred_region
        %s138 = ssub.s32 %s16, 1
        // Predicated region
        $region13: #{tpu_custom_call.1} parent=11 // pred_check
          %p139 = pneg %p75
        $region14: #{tpu_custom_call.1} parent=11 // pred_check_branch
          %141 = sbr.rel (%p139) target = $region16
        $region15: #{tpu_custom_call.1} parent=11 // pred_region
          %s143 = ssub.s32 3072, 3072
          %144 = vsyncadd [#allocation8], %s143
          %s145 = sshll.u32 [#allocation7], 4
          %s146 = int_to_ptr.vmem [resolvable:$true] %s145
          %151 = dma.hbm_to_vmem [thread:$0]  %s1, 3072, %s146, [#allocation8], 64, 64, 4
        $region16: #{tpu_custom_call.1} parent=11 // pred_fallthru
          _
        // Predicated region
        $region17: #{tpu_custom_call.1} parent=11 // pred_check
          %p152 = pneg %p96
        $region18: #{tpu_custom_call.1} parent=11 // pred_check_branch
          %154 = sbr.rel (%p152) target = $region20
        $region19: #{tpu_custom_call.1} parent=11 // pred_region
          %s156 = ssub.s32 6144, 6144
          %157 = vsyncadd [#allocation8], %s156
          %s158 = sshll.u32 [#allocation9], 4
          %s159 = int_to_ptr.vmem [resolvable:$true] %s158
          %164 = dma.hbm_to_vmem [thread:$0]  %s2, 6144, %s159, [#allocation8], 128, 128, 8
        $region20: #{tpu_custom_call.1} parent=11 // pred_fallthru
          _
      $region12: #{tpu_custom_call.1} parent=5 // pred_fallthru
        _
      %p165 = scmp.lt.s32.totalorder %s16, 4
      // Predicated region
      $region21: #{tpu_custom_call.1} parent=5 // pred_check
        %p166 = pneg %p165
      $region22: #{tpu_custom_call.1} parent=5 // pred_check_branch
        %168 = sbr.rel (%p166) target = $region24
      $region23: #{tpu_custom_call.1} parent=5 // pred_region
        // Predicated region
        $region25: #{tpu_custom_call.1} parent=23 // pred_check
          %p169 = pneg %p48
        $region26: #{tpu_custom_call.1} parent=23 // pred_check_branch
          %171 = sbr.rel (%p169) target = $region28
        $region27: #{tpu_custom_call.1} parent=23 // pred_region
          %s172 = sand.u32 %s38, 1
          %s173 = scalar_lea.sflag [#allocation5], %s172
          %s174 = sand.u32 %s38, 1
          %s175 = smul.addr %s174, 384
          %s176 = scalar_lea.vmem [#allocation4], %s175
          %s178 = ssub.s32 6144, 6144
          %179 = vsyncadd %s173, %s178
          %s180 = smul.addr %s23, 96
          %s181 = smul.addr %s180, 64
          %s182 = scalar_lea.hbm %s0, %s181
          %s183 = sshll.u32 %s176, 4
          %s184 = int_to_ptr.vmem [resolvable:$true] %s183
          %189 = dma.hbm_to_vmem [thread:$0]  %s182, 6144, %s184, %s173, 192, 192, 12
        $region28: #{tpu_custom_call.1} parent=23 // pred_fallthru
          _
      $region24: #{tpu_custom_call.1} parent=5 // pred_fallthru
        _
      %p190 = scmp.le.s32.totalorder 1, %s16
      %p191 = scmp.lt.s32.totalorder %s16, 5
      %p192 = pnand %p190, %p191
      %p193 = pneg %p192
      // Predicated region
      $region29: #{tpu_custom_call.1} parent=5 // pred_check
        _
      $region30: #{tpu_custom_call.1} parent=5 // pred_check_branch
        %195 = sbr.rel (%p192) target = $region32
      $region31: #{tpu_custom_call.1} parent=5 // pred_region
        %s196 = ssub.s32 %s16, 1
        %s197 = sand.u32 %s41, 1
        %s198 = scalar_lea.sflag [#allocation5], %s197
        %s199 = sand.u32 %s41, 1
        %s200 = smul.addr %s199, 384
        %s201 = scalar_lea.vmem [#allocation4], %s200
        // Predicated region
        $region33: #{tpu_custom_call.1} parent=31 // pred_check
          %p202 = pneg %p54
        $region34: #{tpu_custom_call.1} parent=31 // pred_check_branch
          %204 = sbr.rel (%p202) target = $region36
        $region35: #{tpu_custom_call.1} parent=31 // pred_region
          %205 = dma.done %s198, 6144
        $region36: #{tpu_custom_call.1} parent=31 // pred_fallthru
          _
        // Predicated region
        $region37: #{tpu_custom_call.1} parent=31 // pred_check
          %p206 = pneg %p75
        $region38: #{tpu_custom_call.1} parent=31 // pred_check_branch
          %208 = sbr.rel (%p206) target = $region40
        $region39: #{tpu_custom_call.1} parent=31 // pred_region
          %209 = dma.done [#allocation8], 3072
        $region40: #{tpu_custom_call.1} parent=31 // pred_fallthru
          _
        // Predicated region
        $region41: #{tpu_custom_call.1} parent=31 // pred_check
          %p210 = pneg %p96
        $region42: #{tpu_custom_call.1} parent=31 // pred_check_branch
          %212 = sbr.rel (%p210) target = $region44
        $region43: #{tpu_custom_call.1} parent=31 // pred_region
          %213 = dma.done [#allocation8], 6144
        $region44: #{tpu_custom_call.1} parent=31 // pred_fallthru
          _
        %s214 = sand.u32 %s41, 1
        %s215 = scalar_lea.sflag [#allocation5], %s214
        %s216 = sand.u32 %s41, 1
        %s217 = smul.addr %s216, 384
        %s218 = scalar_lea.vmem [#allocation4], %s217
        %p219 = pneg %p54
        %p220 = pneg %p51
        %p221 = pneg %p75
        %p222 = pneg %p72
        %p223 = pneg %p96
        %p224 = pneg %p93
        %p225 = pneg %p124
        %p226 = pneg %p121
        %s227 = sand.u32 %s111, 1
        %s228 = scalar_lea.sflag [#allocation6], %s227
        %s229 = sand.u32 %s111, 1
        %s230 = smul.addr %s229, 128
        %s231 = scalar_lea.vmem [#allocation10], %s230
        %s232 = smul.u32 16, %s26
        %p234 = scmp.eq.s32.totalorder %s26, 0
        // Predicated region
        $region45: #{tpu_custom_call.1} parent=31 // pred_check
          %p235 = pneg %p234
        $region46: #{tpu_custom_call.1} parent=31 // pred_check_branch
          %237 = sbr.rel (%p235) target = $region48
        $region47: #{tpu_custom_call.1} parent=31 // pred_region
          %v238 = vld [vmem:[%s201] sm:$0xff]
          %v239 = vld [vmem:[%s201 + $0x8] sm:$0xf]
          %v240 = vld [vmem:[%s201 + $0xc] sm:$0xff]
          %v241 = vld [vmem:[%s201 + $0x14] sm:$0xf]
          %v242 = vld [vmem:[%s201 + $0x18] sm:$0xff]
          %v243 = vld [vmem:[%s201 + $0x20] sm:$0xf]
          %v244 = vld [vmem:[%s201 + $0x24] sm:$0xff]
          %v245 = vld [vmem:[%s201 + $0x2c] sm:$0xf]
          %v246 = vld [vmem:[%s201 + $0x30] sm:$0xff]
          %v247 = vld [vmem:[%s201 + $0x38] sm:$0xf]
          %v248 = vld [vmem:[%s201 + $0x3c] sm:$0xff]
          %v249 = vld [vmem:[%s201 + $0x44] sm:$0xf]
          %v250 = vld [vmem:[%s201 + $0x48] sm:$0xff]
          %v251 = vld [vmem:[%s201 + $0x50] sm:$0xf]
          %v252 = vld [vmem:[%s201 + $0x54] sm:$0xff]
          %v253 = vld [vmem:[%s201 + $0x5c] sm:$0xf]
          %v254 = vld [vmem:[%s201 + $0x60] sm:$0xff]
          %v255 = vld [vmem:[%s201 + $0x68] sm:$0xf]
          %v256 = vld [vmem:[%s201 + $0x6c] sm:$0xff]
          %v257 = vld [vmem:[%s201 + $0x74] sm:$0xf]
          %v258 = vld [vmem:[%s201 + $0x78] sm:$0xff]
          %v259 = vld [vmem:[%s201 + $0x80] sm:$0xf]
          %v260 = vld [vmem:[%s201 + $0x84] sm:$0xff]
          %v261 = vld [vmem:[%s201 + $0x8c] sm:$0xf]
          %v262 = vld [vmem:[%s201 + $0x90] sm:$0xff]
          %v263 = vld [vmem:[%s201 + $0x98] sm:$0xf]
          %v264 = vld [vmem:[%s201 + $0x9c] sm:$0xff]
          %v265 = vld [vmem:[%s201 + $0xa4] sm:$0xf]
          %v266 = vld [vmem:[%s201 + $0xa8] sm:$0xff]
          %v267 = vld [vmem:[%s201 + $0xb0] sm:$0xf]
          %v268 = vld [vmem:[%s201 + $0xb4] sm:$0xff]
          %v269 = vld [vmem:[%s201 + $0xbc] sm:$0xf]
          %v270 = vld [vmem:[%s201 + $0xc0] sm:$0xff]
          %v271 = vld [vmem:[%s201 + $0xc8] sm:$0xf]
          %v272 = vld [vmem:[%s201 + $0xcc] sm:$0xff]
          %v273 = vld [vmem:[%s201 + $0xd4] sm:$0xf]
          %v274 = vld [vmem:[%s201 + $0xd8] sm:$0xff]
          %v275 = vld [vmem:[%s201 + $0xe0] sm:$0xf]
          %v276 = vld [vmem:[%s201 + $0xe4] sm:$0xff]
          %v277 = vld [vmem:[%s201 + $0xec] sm:$0xf]
          %v278 = vld [vmem:[%s201 + $0xf0] sm:$0xff]
          %v279 = vld [vmem:[%s201 + $0xf8] sm:$0xf]
          %v280 = vld [vmem:[%s201 + $0xfc] sm:$0xff]
          %v281 = vld [vmem:[%s201 + $0x104] sm:$0xf]
          %v282 = vld [vmem:[%s201 + $0x108] sm:$0xff]
          %v283 = vld [vmem:[%s201 + $0x110] sm:$0xf]
          %v284 = vld [vmem:[%s201 + $0x114] sm:$0xff]
          %v285 = vld [vmem:[%s201 + $0x11c] sm:$0xf]
          %v286 = vld [vmem:[%s201 + $0x120] sm:$0xff]
          %v287 = vld [vmem:[%s201 + $0x128] sm:$0xf]
          %v288 = vld [vmem:[%s201 + $0x12c] sm:$0xff]
          %v289 = vld [vmem:[%s201 + $0x134] sm:$0xf]
          %v290 = vld [vmem:[%s201 + $0x138] sm:$0xff]
          %v291 = vld [vmem:[%s201 + $0x140] sm:$0xf]
          %v292 = vld [vmem:[%s201 + $0x144] sm:$0xff]
          %v293 = vld [vmem:[%s201 + $0x14c] sm:$0xf]
          %v294 = vld [vmem:[%s201 + $0x150] sm:$0xff]
          %v295 = vld [vmem:[%s201 + $0x158] sm:$0xf]
          %v296 = vld [vmem:[%s201 + $0x15c] sm:$0xff]
          %v297 = vld [vmem:[%s201 + $0x164] sm:$0xf]
          %v298 = vld [vmem:[%s201 + $0x168] sm:$0xff]
          %v299 = vld [vmem:[%s201 + $0x170] sm:$0xf]
          %v300 = vld [vmem:[%s201 + $0x174] sm:$0xff]
          %v301 = vld [vmem:[%s201 + $0x17c] sm:$0xf]
          %v302 = vld [vmem:[#allocation9] sm:$0xff]
          %v303 = vld [vmem:[#allocation9 + $0x8] sm:$0xff]
          %v304 = vld [vmem:[#allocation9 + $0x10] sm:$0xff]
          %v305 = vld [vmem:[#allocation9 + $0x18] sm:$0xff]
          %v306 = vld [vmem:[#allocation9 + $0x20] sm:$0xff]
          %v307 = vld [vmem:[#allocation9 + $0x28] sm:$0xff]
          %v308 = vld [vmem:[#allocation9 + $0x30] sm:$0xff]
          %v309 = vld [vmem:[#allocation9 + $0x38] sm:$0xff]
          %v310 = vld [vmem:[#allocation9 + $0x40] sm:$0xff]
          %v311 = vld [vmem:[#allocation9 + $0x48] sm:$0xff]
          %v312 = vld [vmem:[#allocation9 + $0x50] sm:$0xff]
          %v313 = vld [vmem:[#allocation9 + $0x58] sm:$0xff]
          %v314 = vld [vmem:[#allocation9 + $0x60] sm:$0xff]
          %v315 = vld [vmem:[#allocation9 + $0x68] sm:$0xff]
          %v316 = vld [vmem:[#allocation9 + $0x70] sm:$0xff]
          %v317 = vld [vmem:[#allocation9 + $0x78] sm:$0xff]
          %v318 = vld [vmem:[#allocation9 + $0x80] sm:$0xff]
          %v319 = vld [vmem:[#allocation9 + $0x88] sm:$0xff]
          %v320 = vld [vmem:[#allocation9 + $0x90] sm:$0xff]
          %v321 = vld [vmem:[#allocation9 + $0x98] sm:$0xff]
          %v322 = vld [vmem:[#allocation9 + $0xa0] sm:$0xff]
          %v323 = vld [vmem:[#allocation9 + $0xa8] sm:$0xff]
          %v324 = vld [vmem:[#allocation9 + $0xb0] sm:$0xff]
          %v325 = vld [vmem:[#allocation9 + $0xb8] sm:$0xff]
          %v326 = vld [vmem:[#allocation9 + $0xc0] sm:$0xff]
          %v327 = vld [vmem:[#allocation9 + $0xc8] sm:$0xff]
          %v328 = vld [vmem:[#allocation9 + $0xd0] sm:$0xff]
          %v329 = vld [vmem:[#allocation9 + $0xd8] sm:$0xff]
          %v330 = vld [vmem:[#allocation9 + $0xe0] sm:$0xff]
          %v331 = vld [vmem:[#allocation9 + $0xe8] sm:$0xff]
          %v332 = vld [vmem:[#allocation9 + $0xf0] sm:$0xff]
          %v333 = vld [vmem:[#allocation9 + $0xf8] sm:$0xff]
          %v334 = vld [vmem:[#allocation9 + $0x100] sm:$0xff]
          %v335 = vld [vmem:[#allocation9 + $0x108] sm:$0xff]
          %v336 = vld [vmem:[#allocation9 + $0x110] sm:$0xff]
          %v337 = vld [vmem:[#allocation9 + $0x118] sm:$0xff]
          %v338 = vld [vmem:[#allocation9 + $0x120] sm:$0xff]
          %v339 = vld [vmem:[#allocation9 + $0x128] sm:$0xff]
          %v340 = vld [vmem:[#allocation9 + $0x130] sm:$0xff]
          %v341 = vld [vmem:[#allocation9 + $0x138] sm:$0xff]
          %v342 = vld [vmem:[#allocation9 + $0x140] sm:$0xff]
          %v343 = vld [vmem:[#allocation9 + $0x148] sm:$0xff]
          %v344 = vld [vmem:[#allocation9 + $0x150] sm:$0xff]
          %v345 = vld [vmem:[#allocation9 + $0x158] sm:$0xff]
          %v346 = vld [vmem:[#allocation9 + $0x160] sm:$0xff]
          %v347 = vld [vmem:[#allocation9 + $0x168] sm:$0xff]
          %v348 = vld [vmem:[#allocation9 + $0x170] sm:$0xff]
          %v349 = vld [vmem:[#allocation9 + $0x178] sm:$0xff]
          %v414 = vunpack.c.l.b16 %v238
          %v415 = vunpack.c.h.b16 %v238
          %v416 = vunpack.c.l.b16 %v239
          %v417 = vunpack.c.l.b16 %v240
          %v418 = vunpack.c.h.b16 %v240
          %v419 = vunpack.c.l.b16 %v241
          %v420 = vunpack.c.l.b16 %v242
          %v421 = vunpack.c.h.b16 %v242
          %v422 = vunpack.c.l.b16 %v243
          %v423 = vunpack.c.l.b16 %v244
          %v424 = vunpack.c.h.b16 %v244
          %v425 = vunpack.c.l.b16 %v245
          %v426 = vunpack.c.l.b16 %v246
          %v427 = vunpack.c.h.b16 %v246
          %v428 = vunpack.c.l.b16 %v247
          %v429 = vunpack.c.l.b16 %v248
          %v430 = vunpack.c.h.b16 %v248
          %v431 = vunpack.c.l.b16 %v249
          %v432 = vunpack.c.l.b16 %v250
          %v433 = vunpack.c.h.b16 %v250
          %v434 = vunpack.c.l.b16 %v251
          %v435 = vunpack.c.l.b16 %v252
          %v436 = vunpack.c.h.b16 %v252
          %v437 = vunpack.c.l.b16 %v253
          %v438 = vunpack.c.l.b16 %v254
          %v439 = vunpack.c.h.b16 %v254
          %v440 = vunpack.c.l.b16 %v255
          %v441 = vunpack.c.l.b16 %v256
          %v442 = vunpack.c.h.b16 %v256
          %v443 = vunpack.c.l.b16 %v257
          %v444 = vunpack.c.l.b16 %v258
          %v445 = vunpack.c.h.b16 %v258
          %v446 = vunpack.c.l.b16 %v259
          %v447 = vunpack.c.l.b16 %v260
          %v448 = vunpack.c.h.b16 %v260
          %v449 = vunpack.c.l.b16 %v261
          %v450 = vunpack.c.l.b16 %v262
          %v451 = vunpack.c.h.b16 %v262
          %v452 = vunpack.c.l.b16 %v263
          %v453 = vunpack.c.l.b16 %v264
          %v454 = vunpack.c.h.b16 %v264
          %v455 = vunpack.c.l.b16 %v265
          %v456 = vunpack.c.l.b16 %v266
          %v457 = vunpack.c.h.b16 %v266
          %v458 = vunpack.c.l.b16 %v267
          %v459 = vunpack.c.l.b16 %v268
          %v460 = vunpack.c.h.b16 %v268
          %v461 = vunpack.c.l.b16 %v269
          %v462 = vunpack.c.l.b16 %v270
          %v463 = vunpack.c.h.b16 %v270
          %v464 = vunpack.c.l.b16 %v271
          %v465 = vunpack.c.l.b16 %v272
          %v466 = vunpack.c.h.b16 %v272
          %v467 = vunpack.c.l.b16 %v273
          %v468 = vunpack.c.l.b16 %v274
          %v469 = vunpack.c.h.b16 %v274
          %v470 = vunpack.c.l.b16 %v275
          %v471 = vunpack.c.l.b16 %v276
          %v472 = vunpack.c.h.b16 %v276
          %v473 = vunpack.c.l.b16 %v277
          %v474 = vunpack.c.l.b16 %v278
          %v475 = vunpack.c.h.b16 %v278
          %v476 = vunpack.c.l.b16 %v279
          %v477 = vunpack.c.l.b16 %v280
          %v478 = vunpack.c.h.b16 %v280
          %v479 = vunpack.c.l.b16 %v281
          %v480 = vunpack.c.l.b16 %v282
          %v481 = vunpack.c.h.b16 %v282
          %v482 = vunpack.c.l.b16 %v283
          %v483 = vunpack.c.l.b16 %v284
          %v484 = vunpack.c.h.b16 %v284
          %v485 = vunpack.c.l.b16 %v285
          %v486 = vunpack.c.l.b16 %v286
          %v487 = vunpack.c.h.b16 %v286
          %v488 = vunpack.c.l.b16 %v287
          %v489 = vunpack.c.l.b16 %v288
          %v490 = vunpack.c.h.b16 %v288
          %v491 = vunpack.c.l.b16 %v289
          %v492 = vunpack.c.l.b16 %v290
          %v493 = vunpack.c.h.b16 %v290
          %v494 = vunpack.c.l.b16 %v291
          %v495 = vunpack.c.l.b16 %v292
          %v496 = vunpack.c.h.b16 %v292
          %v497 = vunpack.c.l.b16 %v293
          %v498 = vunpack.c.l.b16 %v294
          %v499 = vunpack.c.h.b16 %v294
          %v500 = vunpack.c.l.b16 %v295
          %v501 = vunpack.c.l.b16 %v296
          %v502 = vunpack.c.h.b16 %v296
          %v503 = vunpack.c.l.b16 %v297
          %v504 = vunpack.c.l.b16 %v298
          %v505 = vunpack.c.h.b16 %v298
          %v506 = vunpack.c.l.b16 %v299
          %v507 = vunpack.c.l.b16 %v300
          %v508 = vunpack.c.h.b16 %v300
          %v509 = vunpack.c.l.b16 %v301
          %v510 = vpack.c.b16 %v417, %v414
          %v511 = vpack.c.b16 %v418, %v415
          %v512 = vpack.c.b16 %v419, %v416
          %v513 = vpack.c.b16 %v423, %v420
          %v514 = vpack.c.b16 %v424, %v421
          %v515 = vpack.c.b16 %v425, %v422
          %v516 = vpack.c.b16 %v429, %v426
          %v517 = vpack.c.b16 %v430, %v427
          %v518 = vpack.c.b16 %v431, %v428
          %v519 = vpack.c.b16 %v435, %v432
          %v520 = vpack.c.b16 %v436, %v433
          %v521 = vpack.c.b16 %v437, %v434
          %v522 = vpack.c.b16 %v441, %v438
          %v523 = vpack.c.b16 %v442, %v439
          %v524 = vpack.c.b16 %v443, %v440
          %v525 = vpack.c.b16 %v447, %v444
          %v526 = vpack.c.b16 %v448, %v445
          %v527 = vpack.c.b16 %v449, %v446
          %v528 = vpack.c.b16 %v453, %v450
          %v529 = vpack.c.b16 %v454, %v451
          %v530 = vpack.c.b16 %v455, %v452
          %v531 = vpack.c.b16 %v459, %v456
          %v532 = vpack.c.b16 %v460, %v457
          %v533 = vpack.c.b16 %v461, %v458
          %v534 = vpack.c.b16 %v465, %v462
          %v535 = vpack.c.b16 %v466, %v463
          %v536 = vpack.c.b16 %v467, %v464
          %v537 = vpack.c.b16 %v471, %v468
          %v538 = vpack.c.b16 %v472, %v469
          %v539 = vpack.c.b16 %v473, %v470
          %v540 = vpack.c.b16 %v477, %v474
          %v541 = vpack.c.b16 %v478, %v475
          %v542 = vpack.c.b16 %v479, %v476
          %v543 = vpack.c.b16 %v483, %v480
          %v544 = vpack.c.b16 %v484, %v481
          %v545 = vpack.c.b16 %v485, %v482
          %v546 = vpack.c.b16 %v489, %v486
          %v547 = vpack.c.b16 %v490, %v487
          %v548 = vpack.c.b16 %v491, %v488
          %v549 = vpack.c.b16 %v495, %v492
          %v550 = vpack.c.b16 %v496, %v493
          %v551 = vpack.c.b16 %v497, %v494
          %v552 = vpack.c.b16 %v501, %v498
          %v553 = vpack.c.b16 %v502, %v499
          %v554 = vpack.c.b16 %v503, %v500
          %v555 = vpack.c.b16 %v507, %v504
          %v556 = vpack.c.b16 %v508, %v505
          %v557 = vpack.c.b16 %v509, %v506
          %v654 = vunpack.c.l.b16 %v302
          %v655 = vunpack.c.h.b16 %v302
          %v656 = vunpack.c.l.b16 %v303
          %v657 = vunpack.c.h.b16 %v303
          %v658 = vunpack.c.l.b16 %v304
          %v659 = vunpack.c.h.b16 %v304
          %v660 = vunpack.c.l.b16 %v305
          %v661 = vunpack.c.h.b16 %v305
          %v662 = vunpack.c.l.b16 %v306
          %v663 = vunpack.c.h.b16 %v306
          %v664 = vunpack.c.l.b16 %v307
          %v665 = vunpack.c.h.b16 %v307
          %v666 = vunpack.c.l.b16 %v308
          %v667 = vunpack.c.h.b16 %v308
          %v668 = vunpack.c.l.b16 %v309
          %v669 = vunpack.c.h.b16 %v309
          %v670 = vunpack.c.l.b16 %v310
          %v671 = vunpack.c.h.b16 %v310
          %v672 = vunpack.c.l.b16 %v311
          %v673 = vunpack.c.h.b16 %v311
          %v674 = vunpack.c.l.b16 %v312
          %v675 = vunpack.c.h.b16 %v312
          %v676 = vunpack.c.l.b16 %v313
          %v677 = vunpack.c.h.b16 %v313
          %v678 = vunpack.c.l.b16 %v314
          %v679 = vunpack.c.h.b16 %v314
          %v680 = vunpack.c.l.b16 %v315
          %v681 = vunpack.c.h.b16 %v315
          %v682 = vunpack.c.l.b16 %v316
          %v683 = vunpack.c.h.b16 %v316
          %v684 = vunpack.c.l.b16 %v317
          %v685 = vunpack.c.h.b16 %v317
          %v686 = vunpack.c.l.b16 %v318
          %v687 = vunpack.c.h.b16 %v318
          %v688 = vunpack.c.l.b16 %v319
          %v689 = vunpack.c.h.b16 %v319
          %v690 = vunpack.c.l.b16 %v320
          %v691 = vunpack.c.h.b16 %v320
          %v692 = vunpack.c.l.b16 %v321
          %v693 = vunpack.c.h.b16 %v321
          %v694 = vunpack.c.l.b16 %v322
          %v695 = vunpack.c.h.b16 %v322
          %v696 = vunpack.c.l.b16 %v323
          %v697 = vunpack.c.h.b16 %v323
          %v698 = vunpack.c.l.b16 %v324
          %v699 = vunpack.c.h.b16 %v324
          %v700 = vunpack.c.l.b16 %v325
          %v701 = vunpack.c.h.b16 %v325
          %v702 = vunpack.c.l.b16 %v326
          %v703 = vunpack.c.h.b16 %v326
          %v704 = vunpack.c.l.b16 %v327
          %v705 = vunpack.c.h.b16 %v327
          %v706 = vunpack.c.l.b16 %v328
          %v707 = vunpack.c.h.b16 %v328
          %v708 = vunpack.c.l.b16 %v329
          %v709 = vunpack.c.h.b16 %v329
          %v710 = vunpack.c.l.b16 %v330
          %v711 = vunpack.c.h.b16 %v330
          %v712 = vunpack.c.l.b16 %v331
          %v713 = vunpack.c.h.b16 %v331
          %v714 = vunpack.c.l.b16 %v332
          %v715 = vunpack.c.h.b16 %v332
          %v716 = vunpack.c.l.b16 %v333
          %v717 = vunpack.c.h.b16 %v333
          %v718 = vunpack.c.l.b16 %v334
          %v719 = vunpack.c.h.b16 %v334
          %v720 = vunpack.c.l.b16 %v335
          %v721 = vunpack.c.h.b16 %v335
          %v722 = vunpack.c.l.b16 %v336
          %v723 = vunpack.c.h.b16 %v336
          %v724 = vunpack.c.l.b16 %v337
          %v725 = vunpack.c.h.b16 %v337
          %v726 = vunpack.c.l.b16 %v338
          %v727 = vunpack.c.h.b16 %v338
          %v728 = vunpack.c.l.b16 %v339
          %v729 = vunpack.c.h.b16 %v339
          %v730 = vunpack.c.l.b16 %v340
          %v731 = vunpack.c.h.b16 %v340
          %v732 = vunpack.c.l.b16 %v341
          %v733 = vunpack.c.h.b16 %v341
          %v734 = vunpack.c.l.b16 %v342
          %v735 = vunpack.c.h.b16 %v342
          %v736 = vunpack.c.l.b16 %v343
          %v737 = vunpack.c.h.b16 %v343
          %v738 = vunpack.c.l.b16 %v344
          %v739 = vunpack.c.h.b16 %v344
          %v740 = vunpack.c.l.b16 %v345
          %v741 = vunpack.c.h.b16 %v345
          %v742 = vunpack.c.l.b16 %v346
          %v743 = vunpack.c.h.b16 %v346
          %v744 = vunpack.c.l.b16 %v347
          %v745 = vunpack.c.h.b16 %v347
          %v746 = vunpack.c.l.b16 %v348
          %v747 = vunpack.c.h.b16 %v348
          %v748 = vunpack.c.l.b16 %v349
          %v749 = vunpack.c.h.b16 %v349
          %v750 = vpack.c.b16 %v656, %v654
          %v751 = vpack.c.b16 %v657, %v655
          %v752 = vpack.c.b16 %v660, %v658
          %v753 = vpack.c.b16 %v661, %v659
          %v754 = vpack.c.b16 %v664, %v662
          %v755 = vpack.c.b16 %v665, %v663
          %v756 = vpack.c.b16 %v668, %v666
          %v757 = vpack.c.b16 %v669, %v667
          %v758 = vpack.c.b16 %v672, %v670
          %v759 = vpack.c.b16 %v673, %v671
          %v760 = vpack.c.b16 %v676, %v674
          %v761 = vpack.c.b16 %v677, %v675
          %v762 = vpack.c.b16 %v680, %v678
          %v763 = vpack.c.b16 %v681, %v679
          %v764 = vpack.c.b16 %v684, %v682
          %v765 = vpack.c.b16 %v685, %v683
          %v766 = vpack.c.b16 %v688, %v686
          %v767 = vpack.c.b16 %v689, %v687
          %v768 = vpack.c.b16 %v692, %v690
          %v769 = vpack.c.b16 %v693, %v691
          %v770 = vpack.c.b16 %v696, %v694
          %v771 = vpack.c.b16 %v697, %v695
          %v772 = vpack.c.b16 %v700, %v698
          %v773 = vpack.c.b16 %v701, %v699
          %v774 = vpack.c.b16 %v704, %v702
          %v775 = vpack.c.b16 %v705, %v703
          %v776 = vpack.c.b16 %v708, %v706
          %v777 = vpack.c.b16 %v709, %v707
          %v778 = vpack.c.b16 %v712, %v710
          %v779 = vpack.c.b16 %v713, %v711
          %v780 = vpack.c.b16 %v716, %v714
          %v781 = vpack.c.b16 %v717, %v715
          %v782 = vpack.c.b16 %v720, %v718
          %v783 = vpack.c.b16 %v721, %v719
          %v784 = vpack.c.b16 %v724, %v722
          %v785 = vpack.c.b16 %v725, %v723
          %v786 = vpack.c.b16 %v728, %v726
          %v787 = vpack.c.b16 %v729, %v727
          %v788 = vpack.c.b16 %v732, %v730
          %v789 = vpack.c.b16 %v733, %v731
          %v790 = vpack.c.b16 %v736, %v734
          %v791 = vpack.c.b16 %v737, %v735
          %v792 = vpack.c.b16 %v740, %v738
          %v793 = vpack.c.b16 %v741, %v739
          %v794 = vpack.c.b16 %v744, %v742
          %v795 = vpack.c.b16 %v745, %v743
          %v796 = vpack.c.b16 %v748, %v746
          %v797 = vpack.c.b16 %v749, %v747
          %846 = vmatprep.subr.bf16.mxu0 %v765
          %847 = vmatpush1.bf16.msra.mxu0 %v764
          %848 = vmatprep.subr.bf16.mxu0 %v763
          %849 = vmatpush1.bf16.msra.mxu0 %v762
          %850 = vmatprep.subr.bf16.mxu0 %v761
          %851 = vmatpush1.bf16.msra.mxu0 %v760
          %852 = vmatprep.subr.bf16.mxu0 %v759
          %853 = vmatpush1.bf16.msra.mxu0 %v758
          %854 = vmatprep.subr.bf16.mxu0 %v757
          %855 = vmatpush1.bf16.msra.mxu0 %v756
          %856 = vmatprep.subr.bf16.mxu0 %v755
          %857 = vmatpush1.bf16.msra.mxu0 %v754
          %858 = vmatprep.subr.bf16.mxu0 %v753
          %859 = vmatpush1.bf16.msra.mxu0 %v752
          %860 = vmatprep.subr.bf16.mxu0 %v751
          %861 = vmatpush1.bf16.msra.mxu0 %v750
          %862 = vmatprep.subr.bf16.mxu0 %v781
          %863 = vmatpush2.bf16.msra.mxu0 %v780
          %864 = vmatprep.subr.bf16.mxu0 %v779
          %865 = vmatpush2.bf16.msra.mxu0 %v778
          %866 = vmatprep.subr.bf16.mxu0 %v777
          %867 = vmatpush2.bf16.msra.mxu0 %v776
          %868 = vmatprep.subr.bf16.mxu0 %v775
          %869 = vmatpush2.bf16.msra.mxu0 %v774
          %870 = vmatprep.subr.bf16.mxu0 %v773
          %871 = vmatpush2.bf16.msra.mxu0 %v772
          %872 = vmatprep.subr.bf16.mxu0 %v771
          %873 = vmatpush2.bf16.msra.mxu0 %v770
          %874 = vmatprep.subr.bf16.mxu0 %v769
          %875 = vmatpush2.bf16.msra.mxu0 %v768
          %876 = vmatprep.subr.bf16.mxu0 %v767
          %877 = vmatpush2.bf16.msra.mxu0 %v766
          %878 = vmatprep.mubr.bf16.mxu0 %v511
          %879 = vmatmul.mubr.bf16.gmra.mxu0 %v510
          %v880 = vpop.f32.mrf.mxu0
          %v881 = vadd.f32 0.0, %v880
          %v882 = vpop.f32.mrf.mxu0
          %v883 = vadd.f32 0.0, %v882
          %v884 = vpop.f32.mrf.mxu0
          %v885 = vadd.f32 0.0, %v884
          %v886 = vpop.f32.mrf.mxu0
          %v887 = vadd.f32 0.0, %v886
          %888 = vmatprep.mubr.bf16.mxu0 %v514
          %889 = vmatmul.mubr.bf16.gmra.mxu0 %v513
          %v890 = vpop.f32.mrf.mxu0
          %v891 = vadd.f32 0.0, %v890
          %v892 = vpop.f32.mrf.mxu0
          %v893 = vadd.f32 0.0, %v892
          %v894 = vpop.f32.mrf.mxu0
          %v895 = vadd.f32 0.0, %v894
          %v896 = vpop.f32.mrf.mxu0
          %v897 = vadd.f32 0.0, %v896
          %898 = vmatprep.mubr.bf16.mxu0 %v517
          %899 = vmatmul.mubr.bf16.gmra.mxu0 %v516
          %v900 = vpop.f32.mrf.mxu0
          %v901 = vadd.f32 0.0, %v900
          %v902 = vpop.f32.mrf.mxu0
          %v903 = vadd.f32 0.0, %v902
          %v904 = vpop.f32.mrf.mxu0
          %v905 = vadd.f32 0.0, %v904
          %v906 = vpop.f32.mrf.mxu0
          %v907 = vadd.f32 0.0, %v906
          %908 = vmatprep.mubr.bf16.mxu0 %v520
          %909 = vmatmul.mubr.bf16.gmra.mxu0 %v519
          %v910 = vpop.f32.mrf.mxu0
          %v911 = vadd.f32 0.0, %v910
          %v912 = vpop.f32.mrf.mxu0
          %v913 = vadd.f32 0.0, %v912
          %v914 = vpop.f32.mrf.mxu0
          %v915 = vadd.f32 0.0, %v914
          %v916 = vpop.f32.mrf.mxu0
          %v917 = vadd.f32 0.0, %v916
          %918 = vmatprep.mubr.bf16.mxu0 %v523
          %919 = vmatmul.mubr.bf16.gmra.mxu0 %v522
          %v920 = vpop.f32.mrf.mxu0
          %v921 = vadd.f32 0.0, %v920
          %v922 = vpop.f32.mrf.mxu0
          %v923 = vadd.f32 0.0, %v922
          %v924 = vpop.f32.mrf.mxu0
          %v925 = vadd.f32 0.0, %v924
          %v926 = vpop.f32.mrf.mxu0
          %v927 = vadd.f32 0.0, %v926
          %928 = vmatprep.mubr.bf16.mxu0 %v526
          %929 = vmatmul.mubr.bf16.gmra.mxu0 %v525
          %v930 = vpop.f32.mrf.mxu0
          %v931 = vadd.f32 0.0, %v930
          %v932 = vpop.f32.mrf.mxu0
          %v933 = vadd.f32 0.0, %v932
          %v934 = vpop.f32.mrf.mxu0
          %v935 = vadd.f32 0.0, %v934
          %v936 = vpop.f32.mrf.mxu0
          %v937 = vadd.f32 0.0, %v936
          %938 = vmatprep.mubr.bf16.mxu0 %v529
          %939 = vmatmul.mubr.bf16.gmra.mxu0 %v528
          %v940 = vpop.f32.mrf.mxu0
          %v941 = vadd.f32 0.0, %v940
          %v942 = vpop.f32.mrf.mxu0
          %v943 = vadd.f32 0.0, %v942
          %v944 = vpop.f32.mrf.mxu0
          %v945 = vadd.f32 0.0, %v944
          %v946 = vpop.f32.mrf.mxu0
          %v947 = vadd.f32 0.0, %v946
          %948 = vmatprep.mubr.bf16.mxu0 %v532
          %949 = vmatmul.mubr.bf16.gmra.mxu0 %v531
          %v950 = vpop.f32.mrf.mxu0
          %v951 = vadd.f32 0.0, %v950
          %v952 = vpop.f32.mrf.mxu0
          %v953 = vadd.f32 0.0, %v952
          %v954 = vpop.f32.mrf.mxu0
          %v955 = vadd.f32 0.0, %v954
          %v956 = vpop.f32.mrf.mxu0
          %v957 = vadd.f32 0.0, %v956
          %958 = vmatprep.mubr.bf16.mxu0 %v535
          %959 = vmatmul.mubr.bf16.gmra.mxu0 %v534
          %v960 = vpop.f32.mrf.mxu0
          %v961 = vadd.f32 0.0, %v960
          %v962 = vpop.f32.mrf.mxu0
          %v963 = vadd.f32 0.0, %v962
          %v964 = vpop.f32.mrf.mxu0
          %v965 = vadd.f32 0.0, %v964
          %v966 = vpop.f32.mrf.mxu0
          %v967 = vadd.f32 0.0, %v966
          %968 = vmatprep.mubr.bf16.mxu0 %v538
          %969 = vmatmul.mubr.bf16.gmra.mxu0 %v537
          %v970 = vpop.f32.mrf.mxu0
          %v971 = vadd.f32 0.0, %v970
          %v972 = vpop.f32.mrf.mxu0
          %v973 = vadd.f32 0.0, %v972
          %v974 = vpop.f32.mrf.mxu0
          %v975 = vadd.f32 0.0, %v974
          %v976 = vpop.f32.mrf.mxu0
          %v977 = vadd.f32 0.0, %v976
          %978 = vmatprep.mubr.bf16.mxu0 %v541
          %979 = vmatmul.mubr.bf16.gmra.mxu0 %v540
          %v980 = vpop.f32.mrf.mxu0
          %v981 = vadd.f32 0.0, %v980
          %v982 = vpop.f32.mrf.mxu0
          %v983 = vadd.f32 0.0, %v982
          %v984 = vpop.f32.mrf.mxu0
          %v985 = vadd.f32 0.0, %v984
          %v986 = vpop.f32.mrf.mxu0
          %v987 = vadd.f32 0.0, %v986
          %988 = vmatprep.mubr.bf16.mxu0 %v544
          %989 = vmatmul.mubr.bf16.gmra.mxu0 %v543
          %v990 = vpop.f32.mrf.mxu0
          %v991 = vadd.f32 0.0, %v990
          %v992 = vpop.f32.mrf.mxu0
          %v993 = vadd.f32 0.0, %v992
          %v994 = vpop.f32.mrf.mxu0
          %v995 = vadd.f32 0.0, %v994
          %v996 = vpop.f32.mrf.mxu0
          %v997 = vadd.f32 0.0, %v996
          %998 = vmatprep.mubr.bf16.mxu0 %v547
          %999 = vmatmul.mubr.bf16.gmra.mxu0 %v546
          %v1000 = vpop.f32.mrf.mxu0
          %v1001 = vadd.f32 0.0, %v1000
          %v1002 = vpop.f32.mrf.mxu0
          %v1003 = vadd.f32 0.0, %v1002
          %v1004 = vpop.f32.mrf.mxu0
          %v1005 = vadd.f32 0.0, %v1004
          %v1006 = vpop.f32.mrf.mxu0
          %v1007 = vadd.f32 0.0, %v1006
          %1008 = vmatprep.mubr.bf16.mxu0 %v550
          %1009 = vmatmul.mubr.bf16.gmra.mxu0 %v549
          %v1010 = vpop.f32.mrf.mxu0
          %v1011 = vadd.f32 0.0, %v1010
          %v1012 = vpop.f32.mrf.mxu0
          %v1013 = vadd.f32 0.0, %v1012
          %v1014 = vpop.f32.mrf.mxu0
          %v1015 = vadd.f32 0.0, %v1014
          %v1016 = vpop.f32.mrf.mxu0
          %v1017 = vadd.f32 0.0, %v1016
          %1018 = vmatprep.mubr.bf16.mxu0 %v553
          %1019 = vmatmul.mubr.bf16.gmra.mxu0 %v552
          %v1020 = vpop.f32.mrf.mxu0
          %v1021 = vadd.f32 0.0, %v1020
          %v1022 = vpop.f32.mrf.mxu0
          %v1023 = vadd.f32 0.0, %v1022
          %v1024 = vpop.f32.mrf.mxu0
          %v1025 = vadd.f32 0.0, %v1024
          %v1026 = vpop.f32.mrf.mxu0
          %v1027 = vadd.f32 0.0, %v1026
          %1028 = vmatprep.mubr.bf16.mxu0 %v556
          %1029 = vmatmul.mubr.bf16.gmra.mxu0 %v555
          %v1030 = vpop.f32.mrf.mxu0
          %v1031 = vadd.f32 0.0, %v1030
          %v1032 = vpop.f32.mrf.mxu0
          %v1033 = vadd.f32 0.0, %v1032
          %v1034 = vpop.f32.mrf.mxu0
          %v1035 = vadd.f32 0.0, %v1034
          %v1036 = vpop.f32.mrf.mxu0
          %v1037 = vadd.f32 0.0, %v1036
          %1038 = vdwg.mxu0
          %1039 = vmatprep.subr.bf16.mxu0 %v797
          %1040 = vmatpush1.bf16.msra.mxu0 %v796
          %1041 = vmatprep.subr.bf16.mxu0 %v795
          %1042 = vmatpush1.bf16.msra.mxu0 %v794
          %1043 = vmatprep.subr.bf16.mxu0 %v793
          %1044 = vmatpush1.bf16.msra.mxu0 %v792
          %1045 = vmatprep.subr.bf16.mxu0 %v791
          %1046 = vmatpush1.bf16.msra.mxu0 %v790
          %1047 = vmatprep.subr.bf16.mxu0 %v789
          %1048 = vmatpush1.bf16.msra.mxu0 %v788
          %1049 = vmatprep.subr.bf16.mxu0 %v787
          %1050 = vmatpush1.bf16.msra.mxu0 %v786
          %1051 = vmatprep.subr.bf16.mxu0 %v785
          %1052 = vmatpush1.bf16.msra.mxu0 %v784
          %1053 = vmatprep.subr.bf16.mxu0 %v783
          %1054 = vmatpush1.bf16.msra.mxu0 %v782
          %1055 = vmatprep.subr.bf16.mxu0 0
          %1056 = vmatpush2.bf16.msra.mxu0 0
          %1057 = vmatprep.subr.bf16.mxu0 0
          %1058 = vmatpush2.bf16.msra.mxu0 0
          %1059 = vmatprep.subr.bf16.mxu0 0
          %1060 = vmatpush2.bf16.msra.mxu0 0
          %1061 = vmatprep.subr.bf16.mxu0 0
          %1062 = vmatpush2.bf16.msra.mxu0 0
          %1063 = vmatprep.subr.bf16.mxu0 0
          %1064 = vmatpush2.bf16.msra.mxu0 0
          %1065 = vmatprep.subr.bf16.mxu0 0
          %1066 = vmatpush2.bf16.msra.mxu0 0
          %1067 = vmatprep.subr.bf16.mxu0 0
          %1068 = vmatpush2.bf16.msra.mxu0 0
          %1069 = vmatprep.subr.bf16.mxu0 0
          %1070 = vmatpush2.bf16.msra.mxu0 0
          %1071 = vmatprep.mubr.bf16.mxu0 0
          %1072 = vmatmul.mubr.bf16.gmra.mxu0 %v512
          %v1073 = vpop.f32.mrf.mxu0
          %v1074 = vadd.f32 %v881, %v1073
          %v1075 = vpop.f32.mrf.mxu0
          %v1076 = vadd.f32 %v883, %v1075
          %v1077 = vpop.f32.mrf.mxu0
          %v1078 = vadd.f32 %v885, %v1077
          %v1079 = vpop.f32.mrf.mxu0
          %v1080 = vadd.f32 %v887, %v1079
          %1081 = vmatprep.mubr.bf16.mxu0 0
          %1082 = vmatmul.mubr.bf16.gmra.mxu0 %v515
          %v1083 = vpop.f32.mrf.mxu0
          %v1084 = vadd.f32 %v891, %v1083
          %v1085 = vpop.f32.mrf.mxu0
          %v1086 = vadd.f32 %v893, %v1085
          %v1087 = vpop.f32.mrf.mxu0
          %v1088 = vadd.f32 %v895, %v1087
          %v1089 = vpop.f32.mrf.mxu0
          %v1090 = vadd.f32 %v897, %v1089
          %1091 = vmatprep.mubr.bf16.mxu0 0
          %1092 = vmatmul.mubr.bf16.gmra.mxu0 %v518
          %v1093 = vpop.f32.mrf.mxu0
          %v1094 = vadd.f32 %v901, %v1093
          %v1095 = vpop.f32.mrf.mxu0
          %v1096 = vadd.f32 %v903, %v1095
          %v1097 = vpop.f32.mrf.mxu0
          %v1098 = vadd.f32 %v905, %v1097
          %v1099 = vpop.f32.mrf.mxu0
          %v1100 = vadd.f32 %v907, %v1099
          %1101 = vmatprep.mubr.bf16.mxu0 0
          %1102 = vmatmul.mubr.bf16.gmra.mxu0 %v521
          %v1103 = vpop.f32.mrf.mxu0
          %v1104 = vadd.f32 %v911, %v1103
          %v1105 = vpop.f32.mrf.mxu0
          %v1106 = vadd.f32 %v913, %v1105
          %v1107 = vpop.f32.mrf.mxu0
          %v1108 = vadd.f32 %v915, %v1107
          %v1109 = vpop.f32.mrf.mxu0
          %v1110 = vadd.f32 %v917, %v1109
          %1111 = vmatprep.mubr.bf16.mxu0 0
          %1112 = vmatmul.mubr.bf16.gmra.mxu0 %v524
          %v1113 = vpop.f32.mrf.mxu0
          %v1114 = vadd.f32 %v921, %v1113
          %v1115 = vpop.f32.mrf.mxu0
          %v1116 = vadd.f32 %v923, %v1115
          %v1117 = vpop.f32.mrf.mxu0
          %v1118 = vadd.f32 %v925, %v1117
          %v1119 = vpop.f32.mrf.mxu0
          %v1120 = vadd.f32 %v927, %v1119
          %1121 = vmatprep.mubr.bf16.mxu0 0
          %1122 = vmatmul.mubr.bf16.gmra.mxu0 %v527
          %v1123 = vpop.f32.mrf.mxu0
          %v1124 = vadd.f32 %v931, %v1123
          %v1125 = vpop.f32.mrf.mxu0
          %v1126 = vadd.f32 %v933, %v1125
          %v1127 = vpop.f32.mrf.mxu0
          %v1128 = vadd.f32 %v935, %v1127
          %v1129 = vpop.f32.mrf.mxu0
          %v1130 = vadd.f32 %v937, %v1129
          %1131 = vmatprep.mubr.bf16.mxu0 0
          %1132 = vmatmul.mubr.bf16.gmra.mxu0 %v530
          %v1133 = vpop.f32.mrf.mxu0
          %v1134 = vadd.f32 %v941, %v1133
          %v1135 = vpop.f32.mrf.mxu0
          %v1136 = vadd.f32 %v943, %v1135
          %v1137 = vpop.f32.mrf.mxu0
          %v1138 = vadd.f32 %v945, %v1137
          %v1139 = vpop.f32.mrf.mxu0
          %v1140 = vadd.f32 %v947, %v1139
          %1141 = vmatprep.mubr.bf16.mxu0 0
          %1142 = vmatmul.mubr.bf16.gmra.mxu0 %v533
          %v1143 = vpop.f32.mrf.mxu0
          %v1144 = vadd.f32 %v951, %v1143
          %v1145 = vpop.f32.mrf.mxu0
          %v1146 = vadd.f32 %v953, %v1145
          %v1147 = vpop.f32.mrf.mxu0
          %v1148 = vadd.f32 %v955, %v1147
          %v1149 = vpop.f32.mrf.mxu0
          %v1150 = vadd.f32 %v957, %v1149
          %1151 = vmatprep.mubr.bf16.mxu0 0
          %1152 = vmatmul.mubr.bf16.gmra.mxu0 %v536
          %v1153 = vpop.f32.mrf.mxu0
          %v1154 = vadd.f32 %v961, %v1153
          %v1155 = vpop.f32.mrf.mxu0
          %v1156 = vadd.f32 %v963, %v1155
          %v1157 = vpop.f32.mrf.mxu0
          %v1158 = vadd.f32 %v965, %v1157
          %v1159 = vpop.f32.mrf.mxu0
          %v1160 = vadd.f32 %v967, %v1159
          %1161 = vmatprep.mubr.bf16.mxu0 0
          %1162 = vmatmul.mubr.bf16.gmra.mxu0 %v539
          %v1163 = vpop.f32.mrf.mxu0
          %v1164 = vadd.f32 %v971, %v1163
          %v1165 = vpop.f32.mrf.mxu0
          %v1166 = vadd.f32 %v973, %v1165
          %v1167 = vpop.f32.mrf.mxu0
          %v1168 = vadd.f32 %v975, %v1167
          %v1169 = vpop.f32.mrf.mxu0
          %v1170 = vadd.f32 %v977, %v1169
          %1171 = vmatprep.mubr.bf16.mxu0 0
          %1172 = vmatmul.mubr.bf16.gmra.mxu0 %v542
          %v1173 = vpop.f32.mrf.mxu0
          %v1174 = vadd.f32 %v981, %v1173
          %v1175 = vpop.f32.mrf.mxu0
          %v1176 = vadd.f32 %v983, %v1175
          %v1177 = vpop.f32.mrf.mxu0
          %v1178 = vadd.f32 %v985, %v1177
          %v1179 = vpop.f32.mrf.mxu0
          %v1180 = vadd.f32 %v987, %v1179
          %1181 = vmatprep.mubr.bf16.mxu0 0
          %1182 = vmatmul.mubr.bf16.gmra.mxu0 %v545
          %v1183 = vpop.f32.mrf.mxu0
          %v1184 = vadd.f32 %v991, %v1183
          %v1185 = vpop.f32.mrf.mxu0
          %v1186 = vadd.f32 %v993, %v1185
          %v1187 = vpop.f32.mrf.mxu0
          %v1188 = vadd.f32 %v995, %v1187
          %v1189 = vpop.f32.mrf.mxu0
          %v1190 = vadd.f32 %v997, %v1189
          %1191 = vmatprep.mubr.bf16.mxu0 0
          %1192 = vmatmul.mubr.bf16.gmra.mxu0 %v548
          %v1193 = vpop.f32.mrf.mxu0
          %v1194 = vadd.f32 %v1001, %v1193
          %v1195 = vpop.f32.mrf.mxu0
          %v1196 = vadd.f32 %v1003, %v1195
          %v1197 = vpop.f32.mrf.mxu0
          %v1198 = vadd.f32 %v1005, %v1197
          %v1199 = vpop.f32.mrf.mxu0
          %v1200 = vadd.f32 %v1007, %v1199
          %1201 = vmatprep.mubr.bf16.mxu0 0
          %1202 = vmatmul.mubr.bf16.gmra.mxu0 %v551
          %v1203 = vpop.f32.mrf.mxu0
          %v1204 = vadd.f32 %v1011, %v1203
          %v1205 = vpop.f32.mrf.mxu0
          %v1206 = vadd.f32 %v1013, %v1205
          %v1207 = vpop.f32.mrf.mxu0
          %v1208 = vadd.f32 %v1015, %v1207
          %v1209 = vpop.f32.mrf.mxu0
          %v1210 = vadd.f32 %v1017, %v1209
          %1211 = vmatprep.mubr.bf16.mxu0 0
          %1212 = vmatmul.mubr.bf16.gmra.mxu0 %v554
          %v1213 = vpop.f32.mrf.mxu0
          %v1214 = vadd.f32 %v1021, %v1213
          %v1215 = vpop.f32.mrf.mxu0
          %v1216 = vadd.f32 %v1023, %v1215
          %v1217 = vpop.f32.mrf.mxu0
          %v1218 = vadd.f32 %v1025, %v1217
          %v1219 = vpop.f32.mrf.mxu0
          %v1220 = vadd.f32 %v1027, %v1219
          %1221 = vmatprep.mubr.bf16.mxu0 0
          %1222 = vmatmul.mubr.bf16.gmra.mxu0 %v557
          %v1223 = vpop.f32.mrf.mxu0
          %v1224 = vadd.f32 %v1031, %v1223
          %v1225 = vpop.f32.mrf.mxu0
          %v1226 = vadd.f32 %v1033, %v1225
          %v1227 = vpop.f32.mrf.mxu0
          %v1228 = vadd.f32 %v1035, %v1227
          %v1229 = vpop.f32.mrf.mxu0
          %v1230 = vadd.f32 %v1037, %v1229
          %1231 = vdwg.mxu0
          %v1232 = vpack.c.bf16 %v1078, %v1074
          %v1233 = vpack.c.bf16 %v1088, %v1084
          %v1234 = vpack.c.bf16 %v1098, %v1094
          %v1235 = vpack.c.bf16 %v1108, %v1104
          %v1236 = vpack.c.bf16 %v1118, %v1114
          %v1237 = vpack.c.bf16 %v1128, %v1124
          %v1238 = vpack.c.bf16 %v1138, %v1134
          %v1239 = vpack.c.bf16 %v1148, %v1144
          %v1240 = vpack.c.bf16 %v1158, %v1154
          %v1241 = vpack.c.bf16 %v1168, %v1164
          %v1242 = vpack.c.bf16 %v1178, %v1174
          %v1243 = vpack.c.bf16 %v1188, %v1184
          %v1244 = vpack.c.bf16 %v1198, %v1194
          %v1245 = vpack.c.bf16 %v1208, %v1204
          %v1246 = vpack.c.bf16 %v1218, %v1214
          %v1247 = vpack.c.bf16 %v1228, %v1224
          %v1264 = vunpack.c.l.b16 %v1232
          %v1265 = vunpack.c.h.b16 %v1232
          %v1266 = vunpack.c.l.b16 %v1233
          %v1267 = vunpack.c.h.b16 %v1233
          %v1268 = vunpack.c.l.b16 %v1234
          %v1269 = vunpack.c.h.b16 %v1234
          %v1270 = vunpack.c.l.b16 %v1235
          %v1271 = vunpack.c.h.b16 %v1235
          %v1272 = vunpack.c.l.b16 %v1236
          %v1273 = vunpack.c.h.b16 %v1236
          %v1274 = vunpack.c.l.b16 %v1237
          %v1275 = vunpack.c.h.b16 %v1237
          %v1276 = vunpack.c.l.b16 %v1238
          %v1277 = vunpack.c.h.b16 %v1238
          %v1278 = vunpack.c.l.b16 %v1239
          %v1279 = vunpack.c.h.b16 %v1239
          %v1280 = vunpack.c.l.b16 %v1240
          %v1281 = vunpack.c.h.b16 %v1240
          %v1282 = vunpack.c.l.b16 %v1241
          %v1283 = vunpack.c.h.b16 %v1241
          %v1284 = vunpack.c.l.b16 %v1242
          %v1285 = vunpack.c.h.b16 %v1242
          %v1286 = vunpack.c.l.b16 %v1243
          %v1287 = vunpack.c.h.b16 %v1243
          %v1288 = vunpack.c.l.b16 %v1244
          %v1289 = vunpack.c.h.b16 %v1244
          %v1290 = vunpack.c.l.b16 %v1245
          %v1291 = vunpack.c.h.b16 %v1245
          %v1292 = vunpack.c.l.b16 %v1246
          %v1293 = vunpack.c.h.b16 %v1246
          %v1294 = vunpack.c.l.b16 %v1247
          %v1295 = vunpack.c.h.b16 %v1247
          %v1296 = vpack.c.b16 %v1264, %v1264
          %v1297 = vpack.c.b16 %v1265, %v1265
          %v1298 = vpack.c.b16 %v1266, %v1266
          %v1299 = vpack.c.b16 %v1267, %v1267
          %v1300 = vpack.c.b16 %v1268, %v1268
          %v1301 = vpack.c.b16 %v1269, %v1269
          %v1302 = vpack.c.b16 %v1270, %v1270
          %v1303 = vpack.c.b16 %v1271, %v1271
          %v1304 = vpack.c.b16 %v1272, %v1272
          %v1305 = vpack.c.b16 %v1273, %v1273
          %v1306 = vpack.c.b16 %v1274, %v1274
          %v1307 = vpack.c.b16 %v1275, %v1275
          %v1308 = vpack.c.b16 %v1276, %v1276
          %v1309 = vpack.c.b16 %v1277, %v1277
          %v1310 = vpack.c.b16 %v1278, %v1278
          %v1311 = vpack.c.b16 %v1279, %v1279
          %v1312 = vpack.c.b16 %v1280, %v1280
          %v1313 = vpack.c.b16 %v1281, %v1281
          %v1314 = vpack.c.b16 %v1282, %v1282
          %v1315 = vpack.c.b16 %v1283, %v1283
          %v1316 = vpack.c.b16 %v1284, %v1284
          %v1317 = vpack.c.b16 %v1285, %v1285
          %v1318 = vpack.c.b16 %v1286, %v1286
          %v1319 = vpack.c.b16 %v1287, %v1287
          %v1320 = vpack.c.b16 %v1288, %v1288
          %v1321 = vpack.c.b16 %v1289, %v1289
          %v1322 = vpack.c.b16 %v1290, %v1290
          %v1323 = vpack.c.b16 %v1291, %v1291
          %v1324 = vpack.c.b16 %v1292, %v1292
          %v1325 = vpack.c.b16 %v1293, %v1293
          %v1326 = vpack.c.b16 %v1294, %v1294
          %v1327 = vpack.c.b16 %v1295, %v1295
          %1360 = vst [vmem:[#allocation2] sm:$0xf] %v1296
          %1361 = vst [vmem:[#allocation2 + $0x4] sm:$0xf] %v1297
          %1362 = vst [vmem:[#allocation2 + $0x8] sm:$0xf] %v1298
          %1363 = vst [vmem:[#allocation2 + $0xc] sm:$0xf] %v1299
          %1364 = vst [vmem:[#allocation2 + $0x10] sm:$0xf] %v1300
          %1365 = vst [vmem:[#allocation2 + $0x14] sm:$0xf] %v1301
          %1366 = vst [vmem:[#allocation2 + $0x18] sm:$0xf] %v1302
          %1367 = vst [vmem:[#allocation2 + $0x1c] sm:$0xf] %v1303
          %1368 = vst [vmem:[#allocation2 + $0x20] sm:$0xf] %v1304
          %1369 = vst [vmem:[#allocation2 + $0x24] sm:$0xf] %v1305
          %1370 = vst [vmem:[#allocation2 + $0x28] sm:$0xf] %v1306
          %1371 = vst [vmem:[#allocation2 + $0x2c] sm:$0xf] %v1307
          %1372 = vst [vmem:[#allocation2 + $0x30] sm:$0xf] %v1308
          %1373 = vst [vmem:[#allocation2 + $0x34] sm:$0xf] %v1309
          %1374 = vst [vmem:[#allocation2 + $0x38] sm:$0xf] %v1310
          %1375 = vst [vmem:[#allocation2 + $0x3c] sm:$0xf] %v1311
          %1376 = vst [vmem:[#allocation2 + $0x40] sm:$0xf] %v1312
          %1377 = vst [vmem:[#allocation2 + $0x44] sm:$0xf] %v1313
          %1378 = vst [vmem:[#allocation2 + $0x48] sm:$0xf] %v1314
          %1379 = vst [vmem:[#allocation2 + $0x4c] sm:$0xf] %v1315
          %1380 = vst [vmem:[#allocation2 + $0x50] sm:$0xf] %v1316
          %1381 = vst [vmem:[#allocation2 + $0x54] sm:$0xf] %v1317
          %1382 = vst [vmem:[#allocation2 + $0x58] sm:$0xf] %v1318
          %1383 = vst [vmem:[#allocation2 + $0x5c] sm:$0xf] %v1319
          %1384 = vst [vmem:[#allocation2 + $0x60] sm:$0xf] %v1320
          %1385 = vst [vmem:[#allocation2 + $0x64] sm:$0xf] %v1321
          %1386 = vst [vmem:[#allocation2 + $0x68] sm:$0xf] %v1322
          %1387 = vst [vmem:[#allocation2 + $0x6c] sm:$0xf] %v1323
          %1388 = vst [vmem:[#allocation2 + $0x70] sm:$0xf] %v1324
          %1389 = vst [vmem:[#allocation2 + $0x74] sm:$0xf] %v1325
          %1390 = vst [vmem:[#allocation2 + $0x78] sm:$0xf] %v1326
          %1391 = vst [vmem:[#allocation2 + $0x7c] sm:$0xf] %v1327
          %v1392 = vpack.c.bf16 %v1080, %v1076
          %v1393 = vpack.c.bf16 %v1090, %v1086
          %v1394 = vpack.c.bf16 %v1100, %v1096
          %v1395 = vpack.c.bf16 %v1110, %v1106
          %v1396 = vpack.c.bf16 %v1120, %v1116
          %v1397 = vpack.c.bf16 %v1130, %v1126
          %v1398 = vpack.c.bf16 %v1140, %v1136
          %v1399 = vpack.c.bf16 %v1150, %v1146
          %v1400 = vpack.c.bf16 %v1160, %v1156
          %v1401 = vpack.c.bf16 %v1170, %v1166
          %v1402 = vpack.c.bf16 %v1180, %v1176
          %v1403 = vpack.c.bf16 %v1190, %v1186
          %v1404 = vpack.c.bf16 %v1200, %v1196
          %v1405 = vpack.c.bf16 %v1210, %v1206
          %v1406 = vpack.c.bf16 %v1220, %v1216
          %v1407 = vpack.c.bf16 %v1230, %v1226
          %v1424 = vunpack.c.l.b16 %v1392
          %v1425 = vunpack.c.h.b16 %v1392
          %v1426 = vunpack.c.l.b16 %v1393
          %v1427 = vunpack.c.h.b16 %v1393
          %v1428 = vunpack.c.l.b16 %v1394
          %v1429 = vunpack.c.h.b16 %v1394
          %v1430 = vunpack.c.l.b16 %v1395
          %v1431 = vunpack.c.h.b16 %v1395
          %v1432 = vunpack.c.l.b16 %v1396
          %v1433 = vunpack.c.h.b16 %v1396
          %v1434 = vunpack.c.l.b16 %v1397
          %v1435 = vunpack.c.h.b16 %v1397
          %v1436 = vunpack.c.l.b16 %v1398
          %v1437 = vunpack.c.h.b16 %v1398
          %v1438 = vunpack.c.l.b16 %v1399
          %v1439 = vunpack.c.h.b16 %v1399
          %v1440 = vunpack.c.l.b16 %v1400
          %v1441 = vunpack.c.h.b16 %v1400
          %v1442 = vunpack.c.l.b16 %v1401
          %v1443 = vunpack.c.h.b16 %v1401
          %v1444 = vunpack.c.l.b16 %v1402
          %v1445 = vunpack.c.h.b16 %v1402
          %v1446 = vunpack.c.l.b16 %v1403
          %v1447 = vunpack.c.h.b16 %v1403
          %v1448 = vunpack.c.l.b16 %v1404
          %v1449 = vunpack.c.h.b16 %v1404
          %v1450 = vunpack.c.l.b16 %v1405
          %v1451 = vunpack.c.h.b16 %v1405
          %v1452 = vunpack.c.l.b16 %v1406
          %v1453 = vunpack.c.h.b16 %v1406
          %v1454 = vunpack.c.l.b16 %v1407
          %v1455 = vunpack.c.h.b16 %v1407
          %v1456 = vpack.c.b16 %v1424, %v1424
          %v1457 = vpack.c.b16 %v1425, %v1425
          %v1458 = vpack.c.b16 %v1426, %v1426
          %v1459 = vpack.c.b16 %v1427, %v1427
          %v1460 = vpack.c.b16 %v1428, %v1428
          %v1461 = vpack.c.b16 %v1429, %v1429
          %v1462 = vpack.c.b16 %v1430, %v1430
          %v1463 = vpack.c.b16 %v1431, %v1431
          %v1464 = vpack.c.b16 %v1432, %v1432
          %v1465 = vpack.c.b16 %v1433, %v1433
          %v1466 = vpack.c.b16 %v1434, %v1434
          %v1467 = vpack.c.b16 %v1435, %v1435
          %v1468 = vpack.c.b16 %v1436, %v1436
          %v1469 = vpack.c.b16 %v1437, %v1437
          %v1470 = vpack.c.b16 %v1438, %v1438
          %v1471 = vpack.c.b16 %v1439, %v1439
          %v1472 = vpack.c.b16 %v1440, %v1440
          %v1473 = vpack.c.b16 %v1441, %v1441
          %v1474 = vpack.c.b16 %v1442, %v1442
          %v1475 = vpack.c.b16 %v1443, %v1443
          %v1476 = vpack.c.b16 %v1444, %v1444
          %v1477 = vpack.c.b16 %v1445, %v1445
          %v1478 = vpack.c.b16 %v1446, %v1446
          %v1479 = vpack.c.b16 %v1447, %v1447
          %v1480 = vpack.c.b16 %v1448, %v1448
          %v1481 = vpack.c.b16 %v1449, %v1449
          %v1482 = vpack.c.b16 %v1450, %v1450
          %v1483 = vpack.c.b16 %v1451, %v1451
          %v1484 = vpack.c.b16 %v1452, %v1452
          %v1485 = vpack.c.b16 %v1453, %v1453
          %v1486 = vpack.c.b16 %v1454, %v1454
          %v1487 = vpack.c.b16 %v1455, %v1455
          %1520 = vst [vmem:[#allocation3] sm:$0xf] %v1456
          %1521 = vst [vmem:[#allocation3 + $0x4] sm:$0xf] %v1457
          %1522 = vst [vmem:[#allocation3 + $0x8] sm:$0xf] %v1458
          %1523 = vst [vmem:[#allocation3 + $0xc] sm:$0xf] %v1459
          %1524 = vst [vmem:[#allocation3 + $0x10] sm:$0xf] %v1460
          %1525 = vst [vmem:[#allocation3 + $0x14] sm:$0xf] %v1461
          %1526 = vst [vmem:[#allocation3 + $0x18] sm:$0xf] %v1462
          %1527 = vst [vmem:[#allocation3 + $0x1c] sm:$0xf] %v1463
          %1528 = vst [vmem:[#allocation3 + $0x20] sm:$0xf] %v1464
          %1529 = vst [vmem:[#allocation3 + $0x24] sm:$0xf] %v1465
          %1530 = vst [vmem:[#allocation3 + $0x28] sm:$0xf] %v1466
          %1531 = vst [vmem:[#allocation3 + $0x2c] sm:$0xf] %v1467
          %1532 = vst [vmem:[#allocation3 + $0x30] sm:$0xf] %v1468
          %1533 = vst [vmem:[#allocation3 + $0x34] sm:$0xf] %v1469
          %1534 = vst [vmem:[#allocation3 + $0x38] sm:$0xf] %v1470
          %1535 = vst [vmem:[#allocation3 + $0x3c] sm:$0xf] %v1471
          %1536 = vst [vmem:[#allocation3 + $0x40] sm:$0xf] %v1472
          %1537 = vst [vmem:[#allocation3 + $0x44] sm:$0xf] %v1473
          %1538 = vst [vmem:[#allocation3 + $0x48] sm:$0xf] %v1474
          %1539 = vst [vmem:[#allocation3 + $0x4c] sm:$0xf] %v1475
          %1540 = vst [vmem:[#allocation3 + $0x50] sm:$0xf] %v1476
          %1541 = vst [vmem:[#allocation3 + $0x54] sm:$0xf] %v1477
          %1542 = vst [vmem:[#allocation3 + $0x58] sm:$0xf] %v1478
          %1543 = vst [vmem:[#allocation3 + $0x5c] sm:$0xf] %v1479
          %1544 = vst [vmem:[#allocation3 + $0x60] sm:$0xf] %v1480
          %1545 = vst [vmem:[#allocation3 + $0x64] sm:$0xf] %v1481
          %1546 = vst [vmem:[#allocation3 + $0x68] sm:$0xf] %v1482
          %1547 = vst [vmem:[#allocation3 + $0x6c] sm:$0xf] %v1483
          %1548 = vst [vmem:[#allocation3 + $0x70] sm:$0xf] %v1484
          %1549 = vst [vmem:[#allocation3 + $0x74] sm:$0xf] %v1485
          %1550 = vst [vmem:[#allocation3 + $0x78] sm:$0xf] %v1486
          %1551 = vst [vmem:[#allocation3 + $0x7c] sm:$0xf] %v1487
        $region48: #{tpu_custom_call.1} parent=31 // pred_fallthru
          _
        %s1552 = smul.u32 %s26, 128
        %s1553 = sshra.s32 %s1552, 3
        %s1554 = sand.u32 %s1552, 7
        %s1555 = smul.u32 %s1553, 3
        %s1556 = smul.addr %s1555, 4
        %s1557 = scalar_lea.vmem %s201, %s1556 [#allocation4]
        %v1558 = vld [vmem:[%s1557] sm:$0xff]
        %v1559 = vld [vmem:[%s1557 + $0x8] sm:$0xf]
        %v1560 = vld [vmem:[%s1557 + $0xc] sm:$0xff]
        %v1561 = vld [vmem:[%s1557 + $0x14] sm:$0xf]
        %v1562 = vld [vmem:[%s1557 + $0x18] sm:$0xff]
        %v1563 = vld [vmem:[%s1557 + $0x20] sm:$0xf]
        %v1564 = vld [vmem:[%s1557 + $0x24] sm:$0xff]
        %v1565 = vld [vmem:[%s1557 + $0x2c] sm:$0xf]
        %v1566 = vld [vmem:[%s1557 + $0x30] sm:$0xff]
        %v1567 = vld [vmem:[%s1557 + $0x38] sm:$0xf]
        %v1568 = vld [vmem:[%s1557 + $0x3c] sm:$0xff]
        %v1569 = vld [vmem:[%s1557 + $0x44] sm:$0xf]
        %v1570 = vld [vmem:[%s1557 + $0x48] sm:$0xff]
        %v1571 = vld [vmem:[%s1557 + $0x50] sm:$0xf]
        %v1572 = vld [vmem:[%s1557 + $0x54] sm:$0xff]
        %v1573 = vld [vmem:[%s1557 + $0x5c] sm:$0xf]
        %v1574 = vld [vmem:[%s1557 + $0x60] sm:$0xff]
        %v1575 = vld [vmem:[%s1557 + $0x68] sm:$0xf]
        %v1576 = vld [vmem:[%s1557 + $0x6c] sm:$0xff]
        %v1577 = vld [vmem:[%s1557 + $0x74] sm:$0xf]
        %v1578 = vld [vmem:[%s1557 + $0x78] sm:$0xff]
        %v1579 = vld [vmem:[%s1557 + $0x80] sm:$0xf]
        %v1580 = vld [vmem:[%s1557 + $0x84] sm:$0xff]
        %v1581 = vld [vmem:[%s1557 + $0x8c] sm:$0xf]
        %v1582 = vld [vmem:[%s1557 + $0x90] sm:$0xff]
        %v1583 = vld [vmem:[%s1557 + $0x98] sm:$0xf]
        %v1584 = vld [vmem:[%s1557 + $0x9c] sm:$0xff]
        %v1585 = vld [vmem:[%s1557 + $0xa4] sm:$0xf]
        %v1586 = vld [vmem:[%s1557 + $0xa8] sm:$0xff]
        %v1587 = vld [vmem:[%s1557 + $0xb0] sm:$0xf]
        %v1588 = vld [vmem:[%s1557 + $0xb4] sm:$0xff]
        %v1589 = vld [vmem:[%s1557 + $0xbc] sm:$0xf]
        %v1590 = vld [vmem:[#allocation7] sm:$0xf]
        %v1591 = vld [vmem:[#allocation7 + $0x4] sm:$0xf]
        %v1592 = vld [vmem:[#allocation7 + $0x8] sm:$0xf]
        %v1593 = vld [vmem:[#allocation7 + $0xc] sm:$0xf]
        %v1594 = vld [vmem:[#allocation7 + $0x10] sm:$0xf]
        %v1595 = vld [vmem:[#allocation7 + $0x14] sm:$0xf]
        %v1596 = vld [vmem:[#allocation7 + $0x18] sm:$0xf]
        %v1597 = vld [vmem:[#allocation7 + $0x1c] sm:$0xf]
        %v1598 = vld [vmem:[#allocation7 + $0x20] sm:$0xf]
        %v1599 = vld [vmem:[#allocation7 + $0x24] sm:$0xf]
        %v1600 = vld [vmem:[#allocation7 + $0x28] sm:$0xf]
        %v1601 = vld [vmem:[#allocation7 + $0x2c] sm:$0xf]
        %v1602 = vld [vmem:[#allocation7 + $0x30] sm:$0xf]
        %v1603 = vld [vmem:[#allocation7 + $0x34] sm:$0xf]
        %v1604 = vld [vmem:[#allocation7 + $0x38] sm:$0xf]
        %v1605 = vld [vmem:[#allocation7 + $0x3c] sm:$0xf]
        %v1606 = vld [vmem:[#allocation7 + $0x40] sm:$0xf]
        %v1607 = vld [vmem:[#allocation7 + $0x44] sm:$0xf]
        %v1608 = vld [vmem:[#allocation7 + $0x48] sm:$0xf]
        %v1609 = vld [vmem:[#allocation7 + $0x4c] sm:$0xf]
        %v1610 = vld [vmem:[#allocation7 + $0x50] sm:$0xf]
        %v1611 = vld [vmem:[#allocation7 + $0x54] sm:$0xf]
        %v1612 = vld [vmem:[#allocation7 + $0x58] sm:$0xf]
        %v1613 = vld [vmem:[#allocation7 + $0x5c] sm:$0xf]
        %v1614 = vld [vmem:[#allocation7 + $0x60] sm:$0xf]
        %v1615 = vld [vmem:[#allocation7 + $0x64] sm:$0xf]
        %v1616 = vld [vmem:[#allocation7 + $0x68] sm:$0xf]
        %v1617 = vld [vmem:[#allocation7 + $0x6c] sm:$0xf]
        %v1618 = vld [vmem:[#allocation7 + $0x70] sm:$0xf]
        %v1619 = vld [vmem:[#allocation7 + $0x74] sm:$0xf]
        %v1620 = vld [vmem:[#allocation7 + $0x78] sm:$0xf]
        %v1621 = vld [vmem:[#allocation7 + $0x7c] sm:$0xf]
        %v1622 = vld [vmem:[#allocation7 + $0x80] sm:$0xf]
        %v1623 = vld [vmem:[#allocation7 + $0x84] sm:$0xf]
        %v1624 = vld [vmem:[#allocation7 + $0x88] sm:$0xf]
        %v1625 = vld [vmem:[#allocation7 + $0x8c] sm:$0xf]
        %v1626 = vld [vmem:[#allocation7 + $0x90] sm:$0xf]
        %v1627 = vld [vmem:[#allocation7 + $0x94] sm:$0xf]
        %v1628 = vld [vmem:[#allocation7 + $0x98] sm:$0xf]
        %v1629 = vld [vmem:[#allocation7 + $0x9c] sm:$0xf]
        %v1630 = vld [vmem:[#allocation7 + $0xa0] sm:$0xf]
        %v1631 = vld [vmem:[#allocation7 + $0xa4] sm:$0xf]
        %v1632 = vld [vmem:[#allocation7 + $0xa8] sm:$0xf]
        %v1633 = vld [vmem:[#allocation7 + $0xac] sm:$0xf]
        %v1634 = vld [vmem:[#allocation7 + $0xb0] sm:$0xf]
        %v1635 = vld [vmem:[#allocation7 + $0xb4] sm:$0xf]
        %v1636 = vld [vmem:[#allocation7 + $0xb8] sm:$0xf]
        %v1637 = vld [vmem:[#allocation7 + $0xbc] sm:$0xf]
        %v1670 = vunpack.c.l.b16 %v1558
        %v1671 = vunpack.c.h.b16 %v1558
        %v1672 = vunpack.c.l.b16 %v1559
        %v1673 = vunpack.c.l.b16 %v1560
        %v1674 = vunpack.c.h.b16 %v1560
        %v1675 = vunpack.c.l.b16 %v1561
        %v1676 = vunpack.c.l.b16 %v1562
        %v1677 = vunpack.c.h.b16 %v1562
        %v1678 = vunpack.c.l.b16 %v1563
        %v1679 = vunpack.c.l.b16 %v1564
        %v1680 = vunpack.c.h.b16 %v1564
        %v1681 = vunpack.c.l.b16 %v1565
        %v1682 = vunpack.c.l.b16 %v1566
        %v1683 = vunpack.c.h.b16 %v1566
        %v1684 = vunpack.c.l.b16 %v1567
        %v1685 = vunpack.c.l.b16 %v1568
        %v1686 = vunpack.c.h.b16 %v1568
        %v1687 = vunpack.c.l.b16 %v1569
        %v1688 = vunpack.c.l.b16 %v1570
        %v1689 = vunpack.c.h.b16 %v1570
        %v1690 = vunpack.c.l.b16 %v1571
        %v1691 = vunpack.c.l.b16 %v1572
        %v1692 = vunpack.c.h.b16 %v1572
        %v1693 = vunpack.c.l.b16 %v1573
        %v1694 = vunpack.c.l.b16 %v1574
        %v1695 = vunpack.c.h.b16 %v1574
        %v1696 = vunpack.c.l.b16 %v1575
        %v1697 = vunpack.c.l.b16 %v1576
        %v1698 = vunpack.c.h.b16 %v1576
        %v1699 = vunpack.c.l.b16 %v1577
        %v1700 = vunpack.c.l.b16 %v1578
        %v1701 = vunpack.c.h.b16 %v1578
        %v1702 = vunpack.c.l.b16 %v1579
        %v1703 = vunpack.c.l.b16 %v1580
        %v1704 = vunpack.c.h.b16 %v1580
        %v1705 = vunpack.c.l.b16 %v1581
        %v1706 = vunpack.c.l.b16 %v1582
        %v1707 = vunpack.c.h.b16 %v1582
        %v1708 = vunpack.c.l.b16 %v1583
        %v1709 = vunpack.c.l.b16 %v1584
        %v1710 = vunpack.c.h.b16 %v1584
        %v1711 = vunpack.c.l.b16 %v1585
        %v1712 = vunpack.c.l.b16 %v1586
        %v1713 = vunpack.c.h.b16 %v1586
        %v1714 = vunpack.c.l.b16 %v1587
        %v1715 = vunpack.c.l.b16 %v1588
        %v1716 = vunpack.c.h.b16 %v1588
        %v1717 = vunpack.c.l.b16 %v1589
        %v1718 = vpack.c.b16 %v1673, %v1670
        %v1719 = vpack.c.b16 %v1674, %v1671
        %v1720 = vpack.c.b16 %v1675, %v1672
        %v1721 = vpack.c.b16 %v1679, %v1676
        %v1722 = vpack.c.b16 %v1680, %v1677
        %v1723 = vpack.c.b16 %v1681, %v1678
        %v1724 = vpack.c.b16 %v1685, %v1682
        %v1725 = vpack.c.b16 %v1686, %v1683
        %v1726 = vpack.c.b16 %v1687, %v1684
        %v1727 = vpack.c.b16 %v1691, %v1688
        %v1728 = vpack.c.b16 %v1692, %v1689
        %v1729 = vpack.c.b16 %v1693, %v1690
        %v1730 = vpack.c.b16 %v1697, %v1694
        %v1731 = vpack.c.b16 %v1698, %v1695
        %v1732 = vpack.c.b16 %v1699, %v1696
        %v1733 = vpack.c.b16 %v1703, %v1700
        %v1734 = vpack.c.b16 %v1704, %v1701
        %v1735 = vpack.c.b16 %v1705, %v1702
        %v1736 = vpack.c.b16 %v1709, %v1706
        %v1737 = vpack.c.b16 %v1710, %v1707
        %v1738 = vpack.c.b16 %v1711, %v1708
        %v1739 = vpack.c.b16 %v1715, %v1712
        %v1740 = vpack.c.b16 %v1716, %v1713
        %v1741 = vpack.c.b16 %v1717, %v1714
        %v1814 = vunpack.c.l.b16 %v1590
        %v1815 = vunpack.c.l.b16 %v1591
        %v1816 = vunpack.c.l.b16 %v1592
        %v1817 = vunpack.c.l.b16 %v1593
        %v1818 = vunpack.c.l.b16 %v1594
        %v1819 = vunpack.c.l.b16 %v1595
        %v1820 = vunpack.c.l.b16 %v1596
        %v1821 = vunpack.c.l.b16 %v1597
        %v1822 = vunpack.c.l.b16 %v1598
        %v1823 = vunpack.c.l.b16 %v1599
        %v1824 = vunpack.c.l.b16 %v1600
        %v1825 = vunpack.c.l.b16 %v1601
        %v1826 = vunpack.c.l.b16 %v1602
        %v1827 = vunpack.c.l.b16 %v1603
        %v1828 = vunpack.c.l.b16 %v1604
        %v1829 = vunpack.c.l.b16 %v1605
        %v1830 = vunpack.c.l.b16 %v1606
        %v1831 = vunpack.c.l.b16 %v1607
        %v1832 = vunpack.c.l.b16 %v1608
        %v1833 = vunpack.c.l.b16 %v1609
        %v1834 = vunpack.c.l.b16 %v1610
        %v1835 = vunpack.c.l.b16 %v1611
        %v1836 = vunpack.c.l.b16 %v1612
        %v1837 = vunpack.c.l.b16 %v1613
        %v1838 = vunpack.c.l.b16 %v1614
        %v1839 = vunpack.c.l.b16 %v1615
        %v1840 = vunpack.c.l.b16 %v1616
        %v1841 = vunpack.c.l.b16 %v1617
        %v1842 = vunpack.c.l.b16 %v1618
        %v1843 = vunpack.c.l.b16 %v1619
        %v1844 = vunpack.c.l.b16 %v1620
        %v1845 = vunpack.c.l.b16 %v1621
        %v1846 = vunpack.c.l.b16 %v1622
        %v1847 = vunpack.c.l.b16 %v1623
        %v1848 = vunpack.c.l.b16 %v1624
        %v1849 = vunpack.c.l.b16 %v1625
        %v1850 = vunpack.c.l.b16 %v1626
        %v1851 = vunpack.c.l.b16 %v1627
        %v1852 = vunpack.c.l.b16 %v1628
        %v1853 = vunpack.c.l.b16 %v1629
        %v1854 = vunpack.c.l.b16 %v1630
        %v1855 = vunpack.c.l.b16 %v1631
        %v1856 = vunpack.c.l.b16 %v1632
        %v1857 = vunpack.c.l.b16 %v1633
        %v1858 = vunpack.c.l.b16 %v1634
        %v1859 = vunpack.c.l.b16 %v1635
        %v1860 = vunpack.c.l.b16 %v1636
        %v1861 = vunpack.c.l.b16 %v1637
        %v1862 = vpack.c.b16 %v1815, %v1814
        %v1863 = vpack.c.b16 %v1817, %v1816
        %v1864 = vpack.c.b16 %v1819, %v1818
        %v1865 = vpack.c.b16 %v1821, %v1820
        %v1866 = vpack.c.b16 %v1823, %v1822
        %v1867 = vpack.c.b16 %v1825, %v1824
        %v1868 = vpack.c.b16 %v1827, %v1826
        %v1869 = vpack.c.b16 %v1829, %v1828
        %v1870 = vpack.c.b16 %v1831, %v1830
        %v1871 = vpack.c.b16 %v1833, %v1832
        %v1872 = vpack.c.b16 %v1835, %v1834
        %v1873 = vpack.c.b16 %v1837, %v1836
        %v1874 = vpack.c.b16 %v1839, %v1838
        %v1875 = vpack.c.b16 %v1841, %v1840
        %v1876 = vpack.c.b16 %v1843, %v1842
        %v1877 = vpack.c.b16 %v1845, %v1844
        %v1878 = vpack.c.b16 %v1847, %v1846
        %v1879 = vpack.c.b16 %v1849, %v1848
        %v1880 = vpack.c.b16 %v1851, %v1850
        %v1881 = vpack.c.b16 %v1853, %v1852
        %v1882 = vpack.c.b16 %v1855, %v1854
        %v1883 = vpack.c.b16 %v1857, %v1856
        %v1884 = vpack.c.b16 %v1859, %v1858
        %v1885 = vpack.c.b16 %v1861, %v1860
        %1910 = vmatprep.subr.bf16.mxu0 0
        %1911 = vmatpush1.bf16.msra.mxu0 %v1869
        %1912 = vmatprep.subr.bf16.mxu0 0
        %1913 = vmatpush1.bf16.msra.mxu0 %v1868
        %1914 = vmatprep.subr.bf16.mxu0 0
        %1915 = vmatpush1.bf16.msra.mxu0 %v1867
        %1916 = vmatprep.subr.bf16.mxu0 0
        %1917 = vmatpush1.bf16.msra.mxu0 %v1866
        %1918 = vmatprep.subr.bf16.mxu0 0
        %1919 = vmatpush1.bf16.msra.mxu0 %v1865
        %1920 = vmatprep.subr.bf16.mxu0 0
        %1921 = vmatpush1.bf16.msra.mxu0 %v1864
        %1922 = vmatprep.subr.bf16.mxu0 0
        %1923 = vmatpush1.bf16.msra.mxu0 %v1863
        %1924 = vmatprep.subr.bf16.mxu0 0
        %1925 = vmatpush1.bf16.msra.mxu0 %v1862
        %1926 = vmatprep.subr.bf16.mxu0 0
        %1927 = vmatpush2.bf16.msra.mxu0 %v1877
        %1928 = vmatprep.subr.bf16.mxu0 0
        %1929 = vmatpush2.bf16.msra.mxu0 %v1876
        %1930 = vmatprep.subr.bf16.mxu0 0
        %1931 = vmatpush2.bf16.msra.mxu0 %v1875
        %1932 = vmatprep.subr.bf16.mxu0 0
        %1933 = vmatpush2.bf16.msra.mxu0 %v1874
        %1934 = vmatprep.subr.bf16.mxu0 0
        %1935 = vmatpush2.bf16.msra.mxu0 %v1873
        %1936 = vmatprep.subr.bf16.mxu0 0
        %1937 = vmatpush2.bf16.msra.mxu0 %v1872
        %1938 = vmatprep.subr.bf16.mxu0 0
        %1939 = vmatpush2.bf16.msra.mxu0 %v1871
        %1940 = vmatprep.subr.bf16.mxu0 0
        %1941 = vmatpush2.bf16.msra.mxu0 %v1870
        %1942 = vmatprep.mubr.bf16.mxu0 %v1719
        %1943 = vmatmul.mubr.bf16.gmra.mxu0 %v1718
        %v1944 = vpop.f32.mrf.mxu0
        %v1945 = vadd.f32 0.0, %v1944
        %v1946 = vpop.f32.mrf.mxu0
        %v1947 = vpop.f32.mrf.mxu0
        %v1948 = vadd.f32 0.0, %v1947
        %v1949 = vpop.f32.mrf.mxu0
        %1950 = vmatprep.mubr.bf16.mxu0 %v1722
        %1951 = vmatmul.mubr.bf16.gmra.mxu0 %v1721
        %v1952 = vpop.f32.mrf.mxu0
        %v1953 = vadd.f32 0.0, %v1952
        %v1954 = vpop.f32.mrf.mxu0
        %v1955 = vpop.f32.mrf.mxu0
        %v1956 = vadd.f32 0.0, %v1955
        %v1957 = vpop.f32.mrf.mxu0
        %1958 = vmatprep.mubr.bf16.mxu0 %v1725
        %1959 = vmatmul.mubr.bf16.gmra.mxu0 %v1724
        %v1960 = vpop.f32.mrf.mxu0
        %v1961 = vadd.f32 0.0, %v1960
        %v1962 = vpop.f32.mrf.mxu0
        %v1963 = vpop.f32.mrf.mxu0
        %v1964 = vadd.f32 0.0, %v1963
        %v1965 = vpop.f32.mrf.mxu0
        %1966 = vmatprep.mubr.bf16.mxu0 %v1728
        %1967 = vmatmul.mubr.bf16.gmra.mxu0 %v1727
        %v1968 = vpop.f32.mrf.mxu0
        %v1969 = vadd.f32 0.0, %v1968
        %v1970 = vpop.f32.mrf.mxu0
        %v1971 = vpop.f32.mrf.mxu0
        %v1972 = vadd.f32 0.0, %v1971
        %v1973 = vpop.f32.mrf.mxu0
        %1974 = vmatprep.mubr.bf16.mxu0 %v1731
        %1975 = vmatmul.mubr.bf16.gmra.mxu0 %v1730
        %v1976 = vpop.f32.mrf.mxu0
        %v1977 = vadd.f32 0.0, %v1976
        %v1978 = vpop.f32.mrf.mxu0
        %v1979 = vpop.f32.mrf.mxu0
        %v1980 = vadd.f32 0.0, %v1979
        %v1981 = vpop.f32.mrf.mxu0
        %1982 = vmatprep.mubr.bf16.mxu0 %v1734
        %1983 = vmatmul.mubr.bf16.gmra.mxu0 %v1733
        %v1984 = vpop.f32.mrf.mxu0
        %v1985 = vadd.f32 0.0, %v1984
        %v1986 = vpop.f32.mrf.mxu0
        %v1987 = vpop.f32.mrf.mxu0
        %v1988 = vadd.f32 0.0, %v1987
        %v1989 = vpop.f32.mrf.mxu0
        %1990 = vmatprep.mubr.bf16.mxu0 %v1737
        %1991 = vmatmul.mubr.bf16.gmra.mxu0 %v1736
        %v1992 = vpop.f32.mrf.mxu0
        %v1993 = vadd.f32 0.0, %v1992
        %v1994 = vpop.f32.mrf.mxu0
        %v1995 = vpop.f32.mrf.mxu0
        %v1996 = vadd.f32 0.0, %v1995
        %v1997 = vpop.f32.mrf.mxu0
        %1998 = vmatprep.mubr.bf16.mxu0 %v1740
        %1999 = vmatmul.mubr.bf16.gmra.mxu0 %v1739
        %v2000 = vpop.f32.mrf.mxu0
        %v2001 = vadd.f32 0.0, %v2000
        %v2002 = vpop.f32.mrf.mxu0
        %v2003 = vpop.f32.mrf.mxu0
        %v2004 = vadd.f32 0.0, %v2003
        %v2005 = vpop.f32.mrf.mxu0
        %2006 = vdwg.mxu0
        %2007 = vmatprep.subr.bf16.mxu0 0
        %2008 = vmatpush1.bf16.msra.mxu0 %v1885
        %2009 = vmatprep.subr.bf16.mxu0 0
        %2010 = vmatpush1.bf16.msra.mxu0 %v1884
        %2011 = vmatprep.subr.bf16.mxu0 0
        %2012 = vmatpush1.bf16.msra.mxu0 %v1883
        %2013 = vmatprep.subr.bf16.mxu0 0
        %2014 = vmatpush1.bf16.msra.mxu0 %v1882
        %2015 = vmatprep.subr.bf16.mxu0 0
        %2016 = vmatpush1.bf16.msra.mxu0 %v1881
        %2017 = vmatprep.subr.bf16.mxu0 0
        %2018 = vmatpush1.bf16.msra.mxu0 %v1880
        %2019 = vmatprep.subr.bf16.mxu0 0
        %2020 = vmatpush1.bf16.msra.mxu0 %v1879
        %2021 = vmatprep.subr.bf16.mxu0 0
        %2022 = vmatpush1.bf16.msra.mxu0 %v1878
        %2023 = vmatprep.subr.bf16.mxu0 0
        %2024 = vmatpush2.bf16.msra.mxu0 0
        %2025 = vmatprep.subr.bf16.mxu0 0
        %2026 = vmatpush2.bf16.msra.mxu0 0
        %2027 = vmatprep.subr.bf16.mxu0 0
        %2028 = vmatpush2.bf16.msra.mxu0 0
        %2029 = vmatprep.subr.bf16.mxu0 0
        %2030 = vmatpush2.bf16.msra.mxu0 0
        %2031 = vmatprep.subr.bf16.mxu0 0
        %2032 = vmatpush2.bf16.msra.mxu0 0
        %2033 = vmatprep.subr.bf16.mxu0 0
        %2034 = vmatpush2.bf16.msra.mxu0 0
        %2035 = vmatprep.subr.bf16.mxu0 0
        %2036 = vmatpush2.bf16.msra.mxu0 0
        %2037 = vmatprep.subr.bf16.mxu0 0
        %2038 = vmatpush2.bf16.msra.mxu0 0
        %2039 = vmatprep.mubr.bf16.mxu0 0
        %2040 = vmatmul.mubr.bf16.gmra.mxu0 %v1720
        %v2041 = vpop.f32.mrf.mxu0
        %v2042 = vadd.f32 %v1945, %v2041
        %v2043 = vpop.f32.mrf.mxu0
        %v2044 = vpop.f32.mrf.mxu0
        %v2045 = vadd.f32 %v1948, %v2044
        %v2046 = vpop.f32.mrf.mxu0
        %2047 = vmatprep.mubr.bf16.mxu0 0
        %2048 = vmatmul.mubr.bf16.gmra.mxu0 %v1723
        %v2049 = vpop.f32.mrf.mxu0
        %v2050 = vadd.f32 %v1953, %v2049
        %v2051 = vpop.f32.mrf.mxu0
        %v2052 = vpop.f32.mrf.mxu0
        %v2053 = vadd.f32 %v1956, %v2052
        %v2054 = vpop.f32.mrf.mxu0
        %2055 = vmatprep.mubr.bf16.mxu0 0
        %2056 = vmatmul.mubr.bf16.gmra.mxu0 %v1726
        %v2057 = vpop.f32.mrf.mxu0
        %v2058 = vadd.f32 %v1961, %v2057
        %v2059 = vpop.f32.mrf.mxu0
        %v2060 = vpop.f32.mrf.mxu0
        %v2061 = vadd.f32 %v1964, %v2060
        %v2062 = vpop.f32.mrf.mxu0
        %2063 = vmatprep.mubr.bf16.mxu0 0
        %2064 = vmatmul.mubr.bf16.gmra.mxu0 %v1729
        %v2065 = vpop.f32.mrf.mxu0
        %v2066 = vadd.f32 %v1969, %v2065
        %v2067 = vpop.f32.mrf.mxu0
        %v2068 = vpop.f32.mrf.mxu0
        %v2069 = vadd.f32 %v1972, %v2068
        %v2070 = vpop.f32.mrf.mxu0
        %2071 = vmatprep.mubr.bf16.mxu0 0
        %2072 = vmatmul.mubr.bf16.gmra.mxu0 %v1732
        %v2073 = vpop.f32.mrf.mxu0
        %v2074 = vadd.f32 %v1977, %v2073
        %v2075 = vpop.f32.mrf.mxu0
        %v2076 = vpop.f32.mrf.mxu0
        %v2077 = vadd.f32 %v1980, %v2076
        %v2078 = vpop.f32.mrf.mxu0
        %2079 = vmatprep.mubr.bf16.mxu0 0
        %2080 = vmatmul.mubr.bf16.gmra.mxu0 %v1735
        %v2081 = vpop.f32.mrf.mxu0
        %v2082 = vadd.f32 %v1985, %v2081
        %v2083 = vpop.f32.mrf.mxu0
        %v2084 = vpop.f32.mrf.mxu0
        %v2085 = vadd.f32 %v1988, %v2084
        %v2086 = vpop.f32.mrf.mxu0
        %2087 = vmatprep.mubr.bf16.mxu0 0
        %2088 = vmatmul.mubr.bf16.gmra.mxu0 %v1738
        %v2089 = vpop.f32.mrf.mxu0
        %v2090 = vadd.f32 %v1993, %v2089
        %v2091 = vpop.f32.mrf.mxu0
        %v2092 = vpop.f32.mrf.mxu0
        %v2093 = vadd.f32 %v1996, %v2092
        %v2094 = vpop.f32.mrf.mxu0
        %2095 = vmatprep.mubr.bf16.mxu0 0
        %2096 = vmatmul.mubr.bf16.gmra.mxu0 %v1741
        %v2097 = vpop.f32.mrf.mxu0
        %v2098 = vadd.f32 %v2001, %v2097
        %v2099 = vpop.f32.mrf.mxu0
        %v2100 = vpop.f32.mrf.mxu0
        %v2101 = vadd.f32 %v2004, %v2100
        %v2102 = vpop.f32.mrf.mxu0
        %2103 = vdwg.mxu0
        %v2104 = vpack.c.bf16 %v2045, %v2042
        %v2105 = vpack.c.bf16 %v2053, %v2050
        %v2106 = vpack.c.bf16 %v2061, %v2058
        %v2107 = vpack.c.bf16 %v2069, %v2066
        %v2108 = vpack.c.bf16 %v2077, %v2074
        %v2109 = vpack.c.bf16 %v2085, %v2082
        %v2110 = vpack.c.bf16 %v2093, %v2090
        %v2111 = vpack.c.bf16 %v2101, %v2098
        %v2112 = vld [vmem:[#allocation2] sm:$0xf]
        %v2113 = vld [vmem:[#allocation2 + $0x4] sm:$0xf]
        %v2114 = vld [vmem:[#allocation2 + $0x8] sm:$0xf]
        %v2115 = vld [vmem:[#allocation2 + $0xc] sm:$0xf]
        %v2116 = vld [vmem:[#allocation2 + $0x10] sm:$0xf]
        %v2117 = vld [vmem:[#allocation2 + $0x14] sm:$0xf]
        %v2118 = vld [vmem:[#allocation2 + $0x18] sm:$0xf]
        %v2119 = vld [vmem:[#allocation2 + $0x1c] sm:$0xf]
        %v2120 = vld [vmem:[#allocation2 + $0x20] sm:$0xf]
        %v2121 = vld [vmem:[#allocation2 + $0x24] sm:$0xf]
        %v2122 = vld [vmem:[#allocation2 + $0x28] sm:$0xf]
        %v2123 = vld [vmem:[#allocation2 + $0x2c] sm:$0xf]
        %v2124 = vld [vmem:[#allocation2 + $0x30] sm:$0xf]
        %v2125 = vld [vmem:[#allocation2 + $0x34] sm:$0xf]
        %v2126 = vld [vmem:[#allocation2 + $0x38] sm:$0xf]
        %v2127 = vld [vmem:[#allocation2 + $0x3c] sm:$0xf]
        %v2128 = vld [vmem:[#allocation2 + $0x40] sm:$0xf]
        %v2129 = vld [vmem:[#allocation2 + $0x44] sm:$0xf]
        %v2130 = vld [vmem:[#allocation2 + $0x48] sm:$0xf]
        %v2131 = vld [vmem:[#allocation2 + $0x4c] sm:$0xf]
        %v2132 = vld [vmem:[#allocation2 + $0x50] sm:$0xf]
        %v2133 = vld [vmem:[#allocation2 + $0x54] sm:$0xf]
        %v2134 = vld [vmem:[#allocation2 + $0x58] sm:$0xf]
        %v2135 = vld [vmem:[#allocation2 + $0x5c] sm:$0xf]
        %v2136 = vld [vmem:[#allocation2 + $0x60] sm:$0xf]
        %v2137 = vld [vmem:[#allocation2 + $0x64] sm:$0xf]
        %v2138 = vld [vmem:[#allocation2 + $0x68] sm:$0xf]
        %v2139 = vld [vmem:[#allocation2 + $0x6c] sm:$0xf]
        %v2140 = vld [vmem:[#allocation2 + $0x70] sm:$0xf]
        %v2141 = vld [vmem:[#allocation2 + $0x74] sm:$0xf]
        %v2142 = vld [vmem:[#allocation2 + $0x78] sm:$0xf]
        %v2143 = vld [vmem:[#allocation2 + $0x7c] sm:$0xf]
        %v2176 = vunpack.c.l.b16 %v2112
        %v2177 = vunpack.c.l.b16 %v2113
        %v2178 = vunpack.c.l.b16 %v2114
        %v2179 = vunpack.c.l.b16 %v2115
        %v2180 = vunpack.c.l.b16 %v2116
        %v2181 = vunpack.c.l.b16 %v2117
        %v2182 = vunpack.c.l.b16 %v2118
        %v2183 = vunpack.c.l.b16 %v2119
        %v2184 = vunpack.c.l.b16 %v2120
        %v2185 = vunpack.c.l.b16 %v2121
        %v2186 = vunpack.c.l.b16 %v2122
        %v2187 = vunpack.c.l.b16 %v2123
        %v2188 = vunpack.c.l.b16 %v2124
        %v2189 = vunpack.c.l.b16 %v2125
        %v2190 = vunpack.c.l.b16 %v2126
        %v2191 = vunpack.c.l.b16 %v2127
        %v2192 = vunpack.c.l.b16 %v2128
        %v2193 = vunpack.c.l.b16 %v2129
        %v2194 = vunpack.c.l.b16 %v2130
        %v2195 = vunpack.c.l.b16 %v2131
        %v2196 = vunpack.c.l.b16 %v2132
        %v2197 = vunpack.c.l.b16 %v2133
        %v2198 = vunpack.c.l.b16 %v2134
        %v2199 = vunpack.c.l.b16 %v2135
        %v2200 = vunpack.c.l.b16 %v2136
        %v2201 = vunpack.c.l.b16 %v2137
        %v2202 = vunpack.c.l.b16 %v2138
        %v2203 = vunpack.c.l.b16 %v2139
        %v2204 = vunpack.c.l.b16 %v2140
        %v2205 = vunpack.c.l.b16 %v2141
        %v2206 = vunpack.c.l.b16 %v2142
        %v2207 = vunpack.c.l.b16 %v2143
        %v2208 = vpack.c.b16 %v2177, %v2176
        %v2209 = vpack.c.b16 %v2179, %v2178
        %v2210 = vpack.c.b16 %v2181, %v2180
        %v2211 = vpack.c.b16 %v2183, %v2182
        %v2212 = vpack.c.b16 %v2185, %v2184
        %v2213 = vpack.c.b16 %v2187, %v2186
        %v2214 = vpack.c.b16 %v2189, %v2188
        %v2215 = vpack.c.b16 %v2191, %v2190
        %v2216 = vpack.c.b16 %v2193, %v2192
        %v2217 = vpack.c.b16 %v2195, %v2194
        %v2218 = vpack.c.b16 %v2197, %v2196
        %v2219 = vpack.c.b16 %v2199, %v2198
        %v2220 = vpack.c.b16 %v2201, %v2200
        %v2221 = vpack.c.b16 %v2203, %v2202
        %v2222 = vpack.c.b16 %v2205, %v2204
        %v2223 = vpack.c.b16 %v2207, %v2206
        %2240 = vmatprep.subr.bf16.mxu0 0
        %2241 = vmatpush1.bf16.xpose.msra.mxu0 %v2215
        %2242 = vmatprep.subr.bf16.mxu0 0
        %2243 = vmatpush1.bf16.xpose.msra.mxu0 %v2214
        %2244 = vmatprep.subr.bf16.mxu0 0
        %2245 = vmatpush1.bf16.xpose.msra.mxu0 %v2213
        %2246 = vmatprep.subr.bf16.mxu0 0
        %2247 = vmatpush1.bf16.xpose.msra.mxu0 %v2212
        %2248 = vmatprep.subr.bf16.mxu0 0
        %2249 = vmatpush1.bf16.xpose.msra.mxu0 %v2211
        %2250 = vmatprep.subr.bf16.mxu0 0
        %2251 = vmatpush1.bf16.xpose.msra.mxu0 %v2210
        %2252 = vmatprep.subr.bf16.mxu0 0
        %2253 = vmatpush1.bf16.xpose.msra.mxu0 %v2209
        %2254 = vmatprep.subr.bf16.mxu0 0
        %2255 = vmatpush1.bf16.xpose.msra.mxu0 %v2208
        %2256 = vmatprep.subr.bf16.mxu0 0
        %2257 = vmatpush2.bf16.xpose.msra.mxu0 %v2223
        %2258 = vmatprep.subr.bf16.mxu0 0
        %2259 = vmatpush2.bf16.xpose.msra.mxu0 %v2222
        %2260 = vmatprep.subr.bf16.mxu0 0
        %2261 = vmatpush2.bf16.xpose.msra.mxu0 %v2221
        %2262 = vmatprep.subr.bf16.mxu0 0
        %2263 = vmatpush2.bf16.xpose.msra.mxu0 %v2220
        %2264 = vmatprep.subr.bf16.mxu0 0
        %2265 = vmatpush2.bf16.xpose.msra.mxu0 %v2219
        %2266 = vmatprep.subr.bf16.mxu0 0
        %2267 = vmatpush2.bf16.xpose.msra.mxu0 %v2218
        %2268 = vmatprep.subr.bf16.mxu0 0
        %2269 = vmatpush2.bf16.xpose.msra.mxu0 %v2217
        %2270 = vmatprep.subr.bf16.mxu0 0
        %2271 = vmatpush2.bf16.xpose.msra.mxu0 %v2216
        %2272 = vmatprep.mubr.bf16.mxu0 0
        %2273 = vmatmul.mubr.bf16.gmra.mxu0 %v2104
        %v2274 = vpop.f32.mrf.mxu0
        %v2275 = vadd.f32 0.0, %v2274
        %v2276 = vpop.f32.mrf.mxu0
        %v2277 = vadd.f32 0.0, %v2276
        %v2278 = vpop.f32.mrf.mxu0
        %v2279 = vadd.f32 0.0, %v2278
        %v2280 = vpop.f32.mrf.mxu0
        %v2281 = vadd.f32 0.0, %v2280
        %2282 = vmatprep.mubr.bf16.mxu0 0
        %2283 = vmatmul.mubr.bf16.gmra.mxu0 %v2105
        %v2284 = vpop.f32.mrf.mxu0
        %v2285 = vadd.f32 0.0, %v2284
        %v2286 = vpop.f32.mrf.mxu0
        %v2287 = vadd.f32 0.0, %v2286
        %v2288 = vpop.f32.mrf.mxu0
        %v2289 = vadd.f32 0.0, %v2288
        %v2290 = vpop.f32.mrf.mxu0
        %v2291 = vadd.f32 0.0, %v2290
        %2292 = vmatprep.mubr.bf16.mxu0 0
        %2293 = vmatmul.mubr.bf16.gmra.mxu0 %v2106
        %v2294 = vpop.f32.mrf.mxu0
        %v2295 = vadd.f32 0.0, %v2294
        %v2296 = vpop.f32.mrf.mxu0
        %v2297 = vadd.f32 0.0, %v2296
        %v2298 = vpop.f32.mrf.mxu0
        %v2299 = vadd.f32 0.0, %v2298
        %v2300 = vpop.f32.mrf.mxu0
        %v2301 = vadd.f32 0.0, %v2300
        %2302 = vmatprep.mubr.bf16.mxu0 0
        %2303 = vmatmul.mubr.bf16.gmra.mxu0 %v2107
        %v2304 = vpop.f32.mrf.mxu0
        %v2305 = vadd.f32 0.0, %v2304
        %v2306 = vpop.f32.mrf.mxu0
        %v2307 = vadd.f32 0.0, %v2306
        %v2308 = vpop.f32.mrf.mxu0
        %v2309 = vadd.f32 0.0, %v2308
        %v2310 = vpop.f32.mrf.mxu0
        %v2311 = vadd.f32 0.0, %v2310
        %2312 = vmatprep.mubr.bf16.mxu0 0
        %2313 = vmatmul.mubr.bf16.gmra.mxu0 %v2108
        %v2314 = vpop.f32.mrf.mxu0
        %v2315 = vadd.f32 0.0, %v2314
        %v2316 = vpop.f32.mrf.mxu0
        %v2317 = vadd.f32 0.0, %v2316
        %v2318 = vpop.f32.mrf.mxu0
        %v2319 = vadd.f32 0.0, %v2318
        %v2320 = vpop.f32.mrf.mxu0
        %v2321 = vadd.f32 0.0, %v2320
        %2322 = vmatprep.mubr.bf16.mxu0 0
        %2323 = vmatmul.mubr.bf16.gmra.mxu0 %v2109
        %v2324 = vpop.f32.mrf.mxu0
        %v2325 = vadd.f32 0.0, %v2324
        %v2326 = vpop.f32.mrf.mxu0
        %v2327 = vadd.f32 0.0, %v2326
        %v2328 = vpop.f32.mrf.mxu0
        %v2329 = vadd.f32 0.0, %v2328
        %v2330 = vpop.f32.mrf.mxu0
        %v2331 = vadd.f32 0.0, %v2330
        %2332 = vmatprep.mubr.bf16.mxu0 0
        %2333 = vmatmul.mubr.bf16.gmra.mxu0 %v2110
        %v2334 = vpop.f32.mrf.mxu0
        %v2335 = vadd.f32 0.0, %v2334
        %v2336 = vpop.f32.mrf.mxu0
        %v2337 = vadd.f32 0.0, %v2336
        %v2338 = vpop.f32.mrf.mxu0
        %v2339 = vadd.f32 0.0, %v2338
        %v2340 = vpop.f32.mrf.mxu0
        %v2341 = vadd.f32 0.0, %v2340
        %2342 = vmatprep.mubr.bf16.mxu0 0
        %2343 = vmatmul.mubr.bf16.gmra.mxu0 %v2111
        %v2344 = vpop.f32.mrf.mxu0
        %v2345 = vadd.f32 0.0, %v2344
        %v2346 = vpop.f32.mrf.mxu0
        %v2347 = vadd.f32 0.0, %v2346
        %v2348 = vpop.f32.mrf.mxu0
        %v2349 = vadd.f32 0.0, %v2348
        %v2350 = vpop.f32.mrf.mxu0
        %v2351 = vadd.f32 0.0, %v2350
        %2352 = vdwg.mxu0
        %v2353 = vlaneseq
        %v2354 = vshrl.u32 %v2353, 7
        %v2355 = vadd.s32 %v2354, 8
        %v2356 = vadd.s32 %v2354, 16
        %v2357 = vadd.s32 %v2354, 24
        %v2358 = vadd.s32 %v2354, 32
        %v2359 = vadd.s32 %v2354, 40
        %v2360 = vadd.s32 %v2354, 48
        %v2361 = vadd.s32 %v2354, 56
        %v2362 = vadd.s32 %v2354, 64
        %v2363 = vadd.s32 %v2354, 72
        %v2364 = vadd.s32 %v2354, 80
        %v2365 = vadd.s32 %v2354, 88
        %v2366 = vadd.s32 %v2354, 96
        %v2367 = vadd.s32 %v2354, 104
        %v2368 = vadd.s32 %v2354, 112
        %v2369 = vadd.s32 %v2354, 120
        %v2370 = vstv %s1552
        %v2371 = vadd.s32 %v2370, %v2354
        %v2372 = vadd.s32 %v2370, %v2355
        %v2373 = vadd.s32 %v2370, %v2356
        %v2374 = vadd.s32 %v2370, %v2357
        %v2375 = vadd.s32 %v2370, %v2358
        %v2376 = vadd.s32 %v2370, %v2359
        %v2377 = vadd.s32 %v2370, %v2360
        %v2378 = vadd.s32 %v2370, %v2361
        %v2379 = vadd.s32 %v2370, %v2362
        %v2380 = vadd.s32 %v2370, %v2363
        %v2381 = vadd.s32 %v2370, %v2364
        %v2382 = vadd.s32 %v2370, %v2365
        %v2383 = vadd.s32 %v2370, %v2366
        %v2384 = vadd.s32 %v2370, %v2367
        %v2385 = vadd.s32 %v2370, %v2368
        %v2386 = vadd.s32 %v2370, %v2369
        %v2387 = vlaneseq
        %v2388 = vand.u32 %v2387, 127
        %v2389 = vadd.s32 %v2388, 128
        %vm2390 = vcmp.ge.s32.totalorder %v2371, %v2388
        %vm2391 = vcmp.ge.s32.totalorder %v2371, %v2389
        %vm2392 = vcmp.ge.s32.totalorder %v2372, %v2388
        %vm2393 = vcmp.ge.s32.totalorder %v2372, %v2389
        %vm2394 = vcmp.ge.s32.totalorder %v2373, %v2388
        %vm2395 = vcmp.ge.s32.totalorder %v2373, %v2389
        %vm2396 = vcmp.ge.s32.totalorder %v2374, %v2388
        %vm2397 = vcmp.ge.s32.totalorder %v2374, %v2389
        %vm2398 = vcmp.ge.s32.totalorder %v2375, %v2388
        %vm2399 = vcmp.ge.s32.totalorder %v2375, %v2389
        %vm2400 = vcmp.ge.s32.totalorder %v2376, %v2388
        %vm2401 = vcmp.ge.s32.totalorder %v2376, %v2389
        %vm2402 = vcmp.ge.s32.totalorder %v2377, %v2388
        %vm2403 = vcmp.ge.s32.totalorder %v2377, %v2389
        %vm2404 = vcmp.ge.s32.totalorder %v2378, %v2388
        %vm2405 = vcmp.ge.s32.totalorder %v2378, %v2389
        %vm2406 = vcmp.ge.s32.totalorder %v2379, %v2388
        %vm2407 = vcmp.ge.s32.totalorder %v2379, %v2389
        %vm2408 = vcmp.ge.s32.totalorder %v2380, %v2388
        %vm2409 = vcmp.ge.s32.totalorder %v2380, %v2389
        %vm2410 = vcmp.ge.s32.totalorder %v2381, %v2388
        %vm2411 = vcmp.ge.s32.totalorder %v2381, %v2389
        %vm2412 = vcmp.ge.s32.totalorder %v2382, %v2388
        %vm2413 = vcmp.ge.s32.totalorder %v2382, %v2389
        %vm2414 = vcmp.ge.s32.totalorder %v2383, %v2388
        %vm2415 = vcmp.ge.s32.totalorder %v2383, %v2389
        %vm2416 = vcmp.ge.s32.totalorder %v2384, %v2388
        %vm2417 = vcmp.ge.s32.totalorder %v2384, %v2389
        %vm2418 = vcmp.ge.s32.totalorder %v2385, %v2388
        %vm2419 = vcmp.ge.s32.totalorder %v2385, %v2389
        %vm2420 = vcmp.ge.s32.totalorder %v2386, %v2388
        %vm2421 = vcmp.ge.s32.totalorder %v2386, %v2389
        %v2422 = vsel %vm2390, %v2275, -inf
        %v2423 = vsel %vm2391, %v2277, -inf
        %v2424 = vsel %vm2392, %v2279, -inf
        %v2425 = vsel %vm2393, %v2281, -inf
        %v2426 = vsel %vm2394, %v2285, -inf
        %v2427 = vsel %vm2395, %v2287, -inf
        %v2428 = vsel %vm2396, %v2289, -inf
        %v2429 = vsel %vm2397, %v2291, -inf
        %v2430 = vsel %vm2398, %v2295, -inf
        %v2431 = vsel %vm2399, %v2297, -inf
        %v2432 = vsel %vm2400, %v2299, -inf
        %v2433 = vsel %vm2401, %v2301, -inf
        %v2434 = vsel %vm2402, %v2305, -inf
        %v2435 = vsel %vm2403, %v2307, -inf
        %v2436 = vsel %vm2404, %v2309, -inf
        %v2437 = vsel %vm2405, %v2311, -inf
        %v2438 = vsel %vm2406, %v2315, -inf
        %v2439 = vsel %vm2407, %v2317, -inf
        %v2440 = vsel %vm2408, %v2319, -inf
        %v2441 = vsel %vm2409, %v2321, -inf
        %v2442 = vsel %vm2410, %v2325, -inf
        %v2443 = vsel %vm2411, %v2327, -inf
        %v2444 = vsel %vm2412, %v2329, -inf
        %v2445 = vsel %vm2413, %v2331, -inf
        %v2446 = vsel %vm2414, %v2335, -inf
        %v2447 = vsel %vm2415, %v2337, -inf
        %v2448 = vsel %vm2416, %v2339, -inf
        %v2449 = vsel %vm2417, %v2341, -inf
        %v2450 = vsel %vm2418, %v2345, -inf
        %v2451 = vsel %vm2419, %v2347, -inf
        %v2452 = vsel %vm2420, %v2349, -inf
        %v2453 = vsel %vm2421, %v2351, -inf
        %v2454 = vmax.f32 %v2422, %v2423
        %2455 = vmax.xlane.f32.xlu0 %v2454
        %v2456 = vpop.xlane.xlu0 %2455
        %v2457 = vmax.f32 %v2424, %v2425
        %2458 = vmax.xlane.f32.xlu0 %v2457
        %v2459 = vpop.xlane.xlu0 %2458
        %v2460 = vmax.f32 %v2426, %v2427
        %2461 = vmax.xlane.f32.xlu0 %v2460
        %v2462 = vpop.xlane.xlu0 %2461
        %v2463 = vmax.f32 %v2428, %v2429
        %2464 = vmax.xlane.f32.xlu0 %v2463
        %v2465 = vpop.xlane.xlu0 %2464
        %v2466 = vmax.f32 %v2430, %v2431
        %2467 = vmax.xlane.f32.xlu0 %v2466
        %v2468 = vpop.xlane.xlu0 %2467
        %v2469 = vmax.f32 %v2432, %v2433
        %2470 = vmax.xlane.f32.xlu0 %v2469
        %v2471 = vpop.xlane.xlu0 %2470
        %v2472 = vmax.f32 %v2434, %v2435
        %2473 = vmax.xlane.f32.xlu0 %v2472
        %v2474 = vpop.xlane.xlu0 %2473
        %v2475 = vmax.f32 %v2436, %v2437
        %2476 = vmax.xlane.f32.xlu0 %v2475
        %v2477 = vpop.xlane.xlu0 %2476
        %v2478 = vmax.f32 %v2438, %v2439
        %2479 = vmax.xlane.f32.xlu0 %v2478
        %v2480 = vpop.xlane.xlu0 %2479
        %v2481 = vmax.f32 %v2440, %v2441
        %2482 = vmax.xlane.f32.xlu0 %v2481
        %v2483 = vpop.xlane.xlu0 %2482
        %v2484 = vmax.f32 %v2442, %v2443
        %2485 = vmax.xlane.f32.xlu0 %v2484
        %v2486 = vpop.xlane.xlu0 %2485
        %v2487 = vmax.f32 %v2444, %v2445
        %2488 = vmax.xlane.f32.xlu0 %v2487
        %v2489 = vpop.xlane.xlu0 %2488
        %v2490 = vmax.f32 %v2446, %v2447
        %2491 = vmax.xlane.f32.xlu0 %v2490
        %v2492 = vpop.xlane.xlu0 %2491
        %v2493 = vmax.f32 %v2448, %v2449
        %2494 = vmax.xlane.f32.xlu0 %v2493
        %v2495 = vpop.xlane.xlu0 %2494
        %v2496 = vmax.f32 %v2450, %v2451
        %2497 = vmax.xlane.f32.xlu0 %v2496
        %v2498 = vpop.xlane.xlu0 %2497
        %v2499 = vmax.f32 %v2452, %v2453
        %2500 = vmax.xlane.f32.xlu0 %v2499
        %v2501 = vpop.xlane.xlu0 %2500
        %v2502 = vsub.f32 %v2422, %v2456
        %v2503 = vsub.f32 %v2423, %v2456
        %v2504 = vsub.f32 %v2424, %v2459
        %v2505 = vsub.f32 %v2425, %v2459
        %v2506 = vsub.f32 %v2426, %v2462
        %v2507 = vsub.f32 %v2427, %v2462
        %v2508 = vsub.f32 %v2428, %v2465
        %v2509 = vsub.f32 %v2429, %v2465
        %v2510 = vsub.f32 %v2430, %v2468
        %v2511 = vsub.f32 %v2431, %v2468
        %v2512 = vsub.f32 %v2432, %v2471
        %v2513 = vsub.f32 %v2433, %v2471
        %v2514 = vsub.f32 %v2434, %v2474
        %v2515 = vsub.f32 %v2435, %v2474
        %v2516 = vsub.f32 %v2436, %v2477
        %v2517 = vsub.f32 %v2437, %v2477
        %v2518 = vsub.f32 %v2438, %v2480
        %v2519 = vsub.f32 %v2439, %v2480
        %v2520 = vsub.f32 %v2440, %v2483
        %v2521 = vsub.f32 %v2441, %v2483
        %v2522 = vsub.f32 %v2442, %v2486
        %v2523 = vsub.f32 %v2443, %v2486
        %v2524 = vsub.f32 %v2444, %v2489
        %v2525 = vsub.f32 %v2445, %v2489
        %v2526 = vsub.f32 %v2446, %v2492
        %v2527 = vsub.f32 %v2447, %v2492
        %v2528 = vsub.f32 %v2448, %v2495
        %v2529 = vsub.f32 %v2449, %v2495
        %v2530 = vsub.f32 %v2450, %v2498
        %v2531 = vsub.f32 %v2451, %v2498
        %v2532 = vsub.f32 %v2452, %v2501
        %v2533 = vsub.f32 %v2453, %v2501
        %v2534 = vmul.f32 %v2502, 1.442695
        %v2535 = vpow.pop %v2534
        %v2536 = vmul.f32 %v2503, 1.442695
        %v2537 = vpow.pop %v2536
        %v2538 = vmul.f32 %v2504, 1.442695
        %v2539 = vpow.pop %v2538
        %v2540 = vmul.f32 %v2505, 1.442695
        %v2541 = vpow.pop %v2540
        %v2542 = vmul.f32 %v2506, 1.442695
        %v2543 = vpow.pop %v2542
        %v2544 = vmul.f32 %v2507, 1.442695
        %v2545 = vpow.pop %v2544
        %v2546 = vmul.f32 %v2508, 1.442695
        %v2547 = vpow.pop %v2546
        %v2548 = vmul.f32 %v2509, 1.442695
        %v2549 = vpow.pop %v2548
        %v2550 = vmul.f32 %v2510, 1.442695
        %v2551 = vpow.pop %v2550
        %v2552 = vmul.f32 %v2511, 1.442695
        %v2553 = vpow.pop %v2552
        %v2554 = vmul.f32 %v2512, 1.442695
        %v2555 = vpow.pop %v2554
        %v2556 = vmul.f32 %v2513, 1.442695
        %v2557 = vpow.pop %v2556
        %v2558 = vmul.f32 %v2514, 1.442695
        %v2559 = vpow.pop %v2558
        %v2560 = vmul.f32 %v2515, 1.442695
        %v2561 = vpow.pop %v2560
        %v2562 = vmul.f32 %v2516, 1.442695
        %v2563 = vpow.pop %v2562
        %v2564 = vmul.f32 %v2517, 1.442695
        %v2565 = vpow.pop %v2564
        %v2566 = vmul.f32 %v2518, 1.442695
        %v2567 = vpow.pop %v2566
        %v2568 = vmul.f32 %v2519, 1.442695
        %v2569 = vpow.pop %v2568
        %v2570 = vmul.f32 %v2520, 1.442695
        %v2571 = vpow.pop %v2570
        %v2572 = vmul.f32 %v2521, 1.442695
        %v2573 = vpow.pop %v2572
        %v2574 = vmul.f32 %v2522, 1.442695
        %v2575 = vpow.pop %v2574
        %v2576 = vmul.f32 %v2523, 1.442695
        %v2577 = vpow.pop %v2576
        %v2578 = vmul.f32 %v2524, 1.442695
        %v2579 = vpow.pop %v2578
        %v2580 = vmul.f32 %v2525, 1.442695
        %v2581 = vpow.pop %v2580
        %v2582 = vmul.f32 %v2526, 1.442695
        %v2583 = vpow.pop %v2582
        %v2584 = vmul.f32 %v2527, 1.442695
        %v2585 = vpow.pop %v2584
        %v2586 = vmul.f32 %v2528, 1.442695
        %v2587 = vpow.pop %v2586
        %v2588 = vmul.f32 %v2529, 1.442695
        %v2589 = vpow.pop %v2588
        %v2590 = vmul.f32 %v2530, 1.442695
        %v2591 = vpow.pop %v2590
        %v2592 = vmul.f32 %v2531, 1.442695
        %v2593 = vpow.pop %v2592
        %v2594 = vmul.f32 %v2532, 1.442695
        %v2595 = vpow.pop %v2594
        %v2596 = vmul.f32 %v2533, 1.442695
        %v2597 = vpow.pop %v2596
        %v2598 = vadd.f32 %v2535, %v2537
        %2599 = vadd.xlane.f32.xlu0 %v2598
        %v2600 = vpop.xlane.xlu0 %2599
        %v2601 = vadd.f32 %v2539, %v2541
        %2602 = vadd.xlane.f32.xlu0 %v2601
        %v2603 = vpop.xlane.xlu0 %2602
        %v2604 = vadd.f32 %v2543, %v2545
        %2605 = vadd.xlane.f32.xlu0 %v2604
        %v2606 = vpop.xlane.xlu0 %2605
        %v2607 = vadd.f32 %v2547, %v2549
        %2608 = vadd.xlane.f32.xlu0 %v2607
        %v2609 = vpop.xlane.xlu0 %2608
        %v2610 = vadd.f32 %v2551, %v2553
        %2611 = vadd.xlane.f32.xlu0 %v2610
        %v2612 = vpop.xlane.xlu0 %2611
        %v2613 = vadd.f32 %v2555, %v2557
        %2614 = vadd.xlane.f32.xlu0 %v2613
        %v2615 = vpop.xlane.xlu0 %2614
        %v2616 = vadd.f32 %v2559, %v2561
        %2617 = vadd.xlane.f32.xlu0 %v2616
        %v2618 = vpop.xlane.xlu0 %2617
        %v2619 = vadd.f32 %v2563, %v2565
        %2620 = vadd.xlane.f32.xlu0 %v2619
        %v2621 = vpop.xlane.xlu0 %2620
        %v2622 = vadd.f32 %v2567, %v2569
        %2623 = vadd.xlane.f32.xlu0 %v2622
        %v2624 = vpop.xlane.xlu0 %2623
        %v2625 = vadd.f32 %v2571, %v2573
        %2626 = vadd.xlane.f32.xlu0 %v2625
        %v2627 = vpop.xlane.xlu0 %2626
        %v2628 = vadd.f32 %v2575, %v2577
        %2629 = vadd.xlane.f32.xlu0 %v2628
        %v2630 = vpop.xlane.xlu0 %2629
        %v2631 = vadd.f32 %v2579, %v2581
        %2632 = vadd.xlane.f32.xlu0 %v2631
        %v2633 = vpop.xlane.xlu0 %2632
        %v2634 = vadd.f32 %v2583, %v2585
        %2635 = vadd.xlane.f32.xlu0 %v2634
        %v2636 = vpop.xlane.xlu0 %2635
        %v2637 = vadd.f32 %v2587, %v2589
        %2638 = vadd.xlane.f32.xlu0 %v2637
        %v2639 = vpop.xlane.xlu0 %2638
        %v2640 = vadd.f32 %v2591, %v2593
        %2641 = vadd.xlane.f32.xlu0 %v2640
        %v2642 = vpop.xlane.xlu0 %2641
        %v2643 = vadd.f32 %v2595, %v2597
        %2644 = vadd.xlane.f32.xlu0 %v2643
        %v2645 = vpop.xlane.xlu0 %2644
        %v2646 = vpack.c.bf16 %v2539, %v2535
        %v2647 = vpack.c.bf16 %v2541, %v2537
        %v2648 = vpack.c.bf16 %v2547, %v2543
        %v2649 = vpack.c.bf16 %v2549, %v2545
        %v2650 = vpack.c.bf16 %v2555, %v2551
        %v2651 = vpack.c.bf16 %v2557, %v2553
        %v2652 = vpack.c.bf16 %v2563, %v2559
        %v2653 = vpack.c.bf16 %v2565, %v2561
        %v2654 = vpack.c.bf16 %v2571, %v2567
        %v2655 = vpack.c.bf16 %v2573, %v2569
        %v2656 = vpack.c.bf16 %v2579, %v2575
        %v2657 = vpack.c.bf16 %v2581, %v2577
        %v2658 = vpack.c.bf16 %v2587, %v2583
        %v2659 = vpack.c.bf16 %v2589, %v2585
        %v2660 = vpack.c.bf16 %v2595, %v2591
        %v2661 = vpack.c.bf16 %v2597, %v2593
        %v2662 = vld [vmem:[#allocation3] sm:$0xf]
        %v2663 = vld [vmem:[#allocation3 + $0x4] sm:$0xf]
        %v2664 = vld [vmem:[#allocation3 + $0x8] sm:$0xf]
        %v2665 = vld [vmem:[#allocation3 + $0xc] sm:$0xf]
        %v2666 = vld [vmem:[#allocation3 + $0x10] sm:$0xf]
        %v2667 = vld [vmem:[#allocation3 + $0x14] sm:$0xf]
        %v2668 = vld [vmem:[#allocation3 + $0x18] sm:$0xf]
        %v2669 = vld [vmem:[#allocation3 + $0x1c] sm:$0xf]
        %v2670 = vld [vmem:[#allocation3 + $0x20] sm:$0xf]
        %v2671 = vld [vmem:[#allocation3 + $0x24] sm:$0xf]
        %v2672 = vld [vmem:[#allocation3 + $0x28] sm:$0xf]
        %v2673 = vld [vmem:[#allocation3 + $0x2c] sm:$0xf]
        %v2674 = vld [vmem:[#allocation3 + $0x30] sm:$0xf]
        %v2675 = vld [vmem:[#allocation3 + $0x34] sm:$0xf]
        %v2676 = vld [vmem:[#allocation3 + $0x38] sm:$0xf]
        %v2677 = vld [vmem:[#allocation3 + $0x3c] sm:$0xf]
        %v2678 = vld [vmem:[#allocation3 + $0x40] sm:$0xf]
        %v2679 = vld [vmem:[#allocation3 + $0x44] sm:$0xf]
        %v2680 = vld [vmem:[#allocation3 + $0x48] sm:$0xf]
        %v2681 = vld [vmem:[#allocation3 + $0x4c] sm:$0xf]
        %v2682 = vld [vmem:[#allocation3 + $0x50] sm:$0xf]
        %v2683 = vld [vmem:[#allocation3 + $0x54] sm:$0xf]
        %v2684 = vld [vmem:[#allocation3 + $0x58] sm:$0xf]
        %v2685 = vld [vmem:[#allocation3 + $0x5c] sm:$0xf]
        %v2686 = vld [vmem:[#allocation3 + $0x60] sm:$0xf]
        %v2687 = vld [vmem:[#allocation3 + $0x64] sm:$0xf]
        %v2688 = vld [vmem:[#allocation3 + $0x68] sm:$0xf]
        %v2689 = vld [vmem:[#allocation3 + $0x6c] sm:$0xf]
        %v2690 = vld [vmem:[#allocation3 + $0x70] sm:$0xf]
        %v2691 = vld [vmem:[#allocation3 + $0x74] sm:$0xf]
        %v2692 = vld [vmem:[#allocation3 + $0x78] sm:$0xf]
        %v2693 = vld [vmem:[#allocation3 + $0x7c] sm:$0xf]
        %v2726 = vunpack.c.l.b16 %v2662
        %v2727 = vunpack.c.l.b16 %v2663
        %v2728 = vunpack.c.l.b16 %v2664
        %v2729 = vunpack.c.l.b16 %v2665
        %v2730 = vunpack.c.l.b16 %v2666
        %v2731 = vunpack.c.l.b16 %v2667
        %v2732 = vunpack.c.l.b16 %v2668
        %v2733 = vunpack.c.l.b16 %v2669
        %v2734 = vunpack.c.l.b16 %v2670
        %v2735 = vunpack.c.l.b16 %v2671
        %v2736 = vunpack.c.l.b16 %v2672
        %v2737 = vunpack.c.l.b16 %v2673
        %v2738 = vunpack.c.l.b16 %v2674
        %v2739 = vunpack.c.l.b16 %v2675
        %v2740 = vunpack.c.l.b16 %v2676
        %v2741 = vunpack.c.l.b16 %v2677
        %v2742 = vunpack.c.l.b16 %v2678
        %v2743 = vunpack.c.l.b16 %v2679
        %v2744 = vunpack.c.l.b16 %v2680
        %v2745 = vunpack.c.l.b16 %v2681
        %v2746 = vunpack.c.l.b16 %v2682
        %v2747 = vunpack.c.l.b16 %v2683
        %v2748 = vunpack.c.l.b16 %v2684
        %v2749 = vunpack.c.l.b16 %v2685
        %v2750 = vunpack.c.l.b16 %v2686
        %v2751 = vunpack.c.l.b16 %v2687
        %v2752 = vunpack.c.l.b16 %v2688
        %v2753 = vunpack.c.l.b16 %v2689
        %v2754 = vunpack.c.l.b16 %v2690
        %v2755 = vunpack.c.l.b16 %v2691
        %v2756 = vunpack.c.l.b16 %v2692
        %v2757 = vunpack.c.l.b16 %v2693
        %v2758 = vpack.c.b16 %v2727, %v2726
        %v2759 = vpack.c.b16 %v2729, %v2728
        %v2760 = vpack.c.b16 %v2731, %v2730
        %v2761 = vpack.c.b16 %v2733, %v2732
        %v2762 = vpack.c.b16 %v2735, %v2734
        %v2763 = vpack.c.b16 %v2737, %v2736
        %v2764 = vpack.c.b16 %v2739, %v2738
        %v2765 = vpack.c.b16 %v2741, %v2740
        %v2766 = vpack.c.b16 %v2743, %v2742
        %v2767 = vpack.c.b16 %v2745, %v2744
        %v2768 = vpack.c.b16 %v2747, %v2746
        %v2769 = vpack.c.b16 %v2749, %v2748
        %v2770 = vpack.c.b16 %v2751, %v2750
        %v2771 = vpack.c.b16 %v2753, %v2752
        %v2772 = vpack.c.b16 %v2755, %v2754
        %v2773 = vpack.c.b16 %v2757, %v2756
        %2790 = vmatprep.subr.bf16.mxu0 0
        %2791 = vmatpush1.bf16.msra.mxu0 %v2765
        %2792 = vmatprep.subr.bf16.mxu0 0
        %2793 = vmatpush1.bf16.msra.mxu0 %v2764
        %2794 = vmatprep.subr.bf16.mxu0 0
        %2795 = vmatpush1.bf16.msra.mxu0 %v2763
        %2796 = vmatprep.subr.bf16.mxu0 0
        %2797 = vmatpush1.bf16.msra.mxu0 %v2762
        %2798 = vmatprep.subr.bf16.mxu0 0
        %2799 = vmatpush1.bf16.msra.mxu0 %v2761
        %2800 = vmatprep.subr.bf16.mxu0 0
        %2801 = vmatpush1.bf16.msra.mxu0 %v2760
        %2802 = vmatprep.subr.bf16.mxu0 0
        %2803 = vmatpush1.bf16.msra.mxu0 %v2759
        %2804 = vmatprep.subr.bf16.mxu0 0
        %2805 = vmatpush1.bf16.msra.mxu0 %v2758
        %2806 = vmatprep.subr.bf16.mxu0 0
        %2807 = vmatpush2.bf16.msra.mxu0 %v2773
        %2808 = vmatprep.subr.bf16.mxu0 0
        %2809 = vmatpush2.bf16.msra.mxu0 %v2772
        %2810 = vmatprep.subr.bf16.mxu0 0
        %2811 = vmatpush2.bf16.msra.mxu0 %v2771
        %2812 = vmatprep.subr.bf16.mxu0 0
        %2813 = vmatpush2.bf16.msra.mxu0 %v2770
        %2814 = vmatprep.subr.bf16.mxu0 0
        %2815 = vmatpush2.bf16.msra.mxu0 %v2769
        %2816 = vmatprep.subr.bf16.mxu0 0
        %2817 = vmatpush2.bf16.msra.mxu0 %v2768
        %2818 = vmatprep.subr.bf16.mxu0 0
        %2819 = vmatpush2.bf16.msra.mxu0 %v2767
        %2820 = vmatprep.subr.bf16.mxu0 0
        %2821 = vmatpush2.bf16.msra.mxu0 %v2766
        %2822 = vmatprep.mubr.bf16.mxu0 %v2647
        %2823 = vmatmul.mubr.bf16.gmra.mxu0 %v2646
        %v2824 = vpop.f32.mrf.mxu0
        %v2825 = vadd.f32 0.0, %v2824
        %v2826 = vpop.f32.mrf.mxu0
        %v2827 = vpop.f32.mrf.mxu0
        %v2828 = vadd.f32 0.0, %v2827
        %v2829 = vpop.f32.mrf.mxu0
        %2830 = vmatprep.mubr.bf16.mxu0 %v2649
        %2831 = vmatmul.mubr.bf16.gmra.mxu0 %v2648
        %v2832 = vpop.f32.mrf.mxu0
        %v2833 = vadd.f32 0.0, %v2832
        %v2834 = vpop.f32.mrf.mxu0
        %v2835 = vpop.f32.mrf.mxu0
        %v2836 = vadd.f32 0.0, %v2835
        %v2837 = vpop.f32.mrf.mxu0
        %2838 = vmatprep.mubr.bf16.mxu0 %v2651
        %2839 = vmatmul.mubr.bf16.gmra.mxu0 %v2650
        %v2840 = vpop.f32.mrf.mxu0
        %v2841 = vadd.f32 0.0, %v2840
        %v2842 = vpop.f32.mrf.mxu0
        %v2843 = vpop.f32.mrf.mxu0
        %v2844 = vadd.f32 0.0, %v2843
        %v2845 = vpop.f32.mrf.mxu0
        %2846 = vmatprep.mubr.bf16.mxu0 %v2653
        %2847 = vmatmul.mubr.bf16.gmra.mxu0 %v2652
        %v2848 = vpop.f32.mrf.mxu0
        %v2849 = vadd.f32 0.0, %v2848
        %v2850 = vpop.f32.mrf.mxu0
        %v2851 = vpop.f32.mrf.mxu0
        %v2852 = vadd.f32 0.0, %v2851
        %v2853 = vpop.f32.mrf.mxu0
        %2854 = vmatprep.mubr.bf16.mxu0 %v2655
        %2855 = vmatmul.mubr.bf16.gmra.mxu0 %v2654
        %v2856 = vpop.f32.mrf.mxu0
        %v2857 = vadd.f32 0.0, %v2856
        %v2858 = vpop.f32.mrf.mxu0
        %v2859 = vpop.f32.mrf.mxu0
        %v2860 = vadd.f32 0.0, %v2859
        %v2861 = vpop.f32.mrf.mxu0
        %2862 = vmatprep.mubr.bf16.mxu0 %v2657
        %2863 = vmatmul.mubr.bf16.gmra.mxu0 %v2656
        %v2864 = vpop.f32.mrf.mxu0
        %v2865 = vadd.f32 0.0, %v2864
        %v2866 = vpop.f32.mrf.mxu0
        %v2867 = vpop.f32.mrf.mxu0
        %v2868 = vadd.f32 0.0, %v2867
        %v2869 = vpop.f32.mrf.mxu0
        %2870 = vmatprep.mubr.bf16.mxu0 %v2659
        %2871 = vmatmul.mubr.bf16.gmra.mxu0 %v2658
        %v2872 = vpop.f32.mrf.mxu0
        %v2873 = vadd.f32 0.0, %v2872
        %v2874 = vpop.f32.mrf.mxu0
        %v2875 = vpop.f32.mrf.mxu0
        %v2876 = vadd.f32 0.0, %v2875
        %v2877 = vpop.f32.mrf.mxu0
        %2878 = vmatprep.mubr.bf16.mxu0 %v2661
        %2879 = vmatmul.mubr.bf16.gmra.mxu0 %v2660
        %v2880 = vpop.f32.mrf.mxu0
        %v2881 = vadd.f32 0.0, %v2880
        %v2882 = vpop.f32.mrf.mxu0
        %v2883 = vpop.f32.mrf.mxu0
        %v2884 = vadd.f32 0.0, %v2883
        %v2885 = vpop.f32.mrf.mxu0
        %2886 = vdwg.mxu0
        %v2887 = vrcp.pop %v2600
        %v2888 = vrcp.pop %v2603
        %v2889 = vrcp.pop %v2606
        %v2890 = vrcp.pop %v2609
        %v2891 = vrcp.pop %v2612
        %v2892 = vrcp.pop %v2615
        %v2893 = vrcp.pop %v2618
        %v2894 = vrcp.pop %v2621
        %v2895 = vrcp.pop %v2624
        %v2896 = vrcp.pop %v2627
        %v2897 = vrcp.pop %v2630
        %v2898 = vrcp.pop %v2633
        %v2899 = vrcp.pop %v2636
        %v2900 = vrcp.pop %v2639
        %v2901 = vrcp.pop %v2642
        %v2902 = vrcp.pop %v2645
        %v2903 = vmul.f32 %v2825, %v2887
        %v2904 = vmul.f32 %v2828, %v2888
        %v2905 = vmul.f32 %v2833, %v2889
        %v2906 = vmul.f32 %v2836, %v2890
        %v2907 = vmul.f32 %v2841, %v2891
        %v2908 = vmul.f32 %v2844, %v2892
        %v2909 = vmul.f32 %v2849, %v2893
        %v2910 = vmul.f32 %v2852, %v2894
        %v2911 = vmul.f32 %v2857, %v2895
        %v2912 = vmul.f32 %v2860, %v2896
        %v2913 = vmul.f32 %v2865, %v2897
        %v2914 = vmul.f32 %v2868, %v2898
        %v2915 = vmul.f32 %v2873, %v2899
        %v2916 = vmul.f32 %v2876, %v2900
        %v2917 = vmul.f32 %v2881, %v2901
        %v2918 = vmul.f32 %v2884, %v2902
        %2919 = vst [vmem:[%s231] sm:$0xff] %v2903
        %2920 = vst [vmem:[%s231 + $0x8] sm:$0xff] %v2904
        %2921 = vst [vmem:[%s231 + $0x10] sm:$0xff] %v2905
        %2922 = vst [vmem:[%s231 + $0x18] sm:$0xff] %v2906
        %2923 = vst [vmem:[%s231 + $0x20] sm:$0xff] %v2907
        %2924 = vst [vmem:[%s231 + $0x28] sm:$0xff] %v2908
        %2925 = vst [vmem:[%s231 + $0x30] sm:$0xff] %v2909
        %2926 = vst [vmem:[%s231 + $0x38] sm:$0xff] %v2910
        %2927 = vst [vmem:[%s231 + $0x40] sm:$0xff] %v2911
        %2928 = vst [vmem:[%s231 + $0x48] sm:$0xff] %v2912
        %2929 = vst [vmem:[%s231 + $0x50] sm:$0xff] %v2913
        %2930 = vst [vmem:[%s231 + $0x58] sm:$0xff] %v2914
        %2931 = vst [vmem:[%s231 + $0x60] sm:$0xff] %v2915
        %2932 = vst [vmem:[%s231 + $0x68] sm:$0xff] %v2916
        %2933 = vst [vmem:[%s231 + $0x70] sm:$0xff] %v2917
        %2934 = vst [vmem:[%s231 + $0x78] sm:$0xff] %v2918
        %s2935 = sand.u32 %s111, 1
        %s2936 = scalar_lea.sflag [#allocation6], %s2935
        %s2937 = sand.u32 %s111, 1
        %s2938 = smul.addr %s2937, 128
        %s2939 = scalar_lea.vmem [#allocation10], %s2938
        // Predicated region
        $region49: #{tpu_custom_call.1} parent=31 // pred_check
          %p2940 = pneg %p121
        $region50: #{tpu_custom_call.1} parent=31 // pred_check_branch
          %2942 = sbr.rel (%p2940) target = $region52
        $region51: #{tpu_custom_call.1} parent=31 // pred_region
          %s2943 = smul.u32 16, %s26
          %s2945 = ssub.s32 2048, 2048
          %2946 = vsyncadd %s2936, %s2945
          %s2947 = smul.addr %s25, 32
          %s2948 = sadd.s32 %s2943, %s2947
          %s2949 = smul.addr %s2948, 128
          %s2950 = scalar_lea.hbm %s3, %s2949
          %s2951 = sshll.u32 %s2939, 4
          %s2952 = int_to_ptr.vmem [resolvable:$true] %s2951
          %2957 = dma.vmem_to_hbm [thread:$0]  %s2952, 2048, %s2950, %s2936, 128, 128, 8
        $region52: #{tpu_custom_call.1} parent=31 // pred_fallthru
          _
      $region32: #{tpu_custom_call.1} parent=5 // pred_fallthru
        _
      %p2958 = scmp.le.s32.totalorder 2, %s16
      // Predicated region
      $region53: #{tpu_custom_call.1} parent=5 // pred_check
        %p2959 = pneg %p2958
      $region54: #{tpu_custom_call.1} parent=5 // pred_check_branch
        %2961 = sbr.rel (%p2959) target = $region56
      $region55: #{tpu_custom_call.1} parent=5 // pred_region
        %s2962 = ssub.s32 %s16, 2
        // Predicated region
        $region57: #{tpu_custom_call.1} parent=55 // pred_check
          %p2963 = pneg %p127
        $region58: #{tpu_custom_call.1} parent=55 // pred_check_branch
          %2965 = sbr.rel (%p2963) target = $region60
        $region59: #{tpu_custom_call.1} parent=55 // pred_region
          %s2966 = sand.u32 %s112, 1
          %s2967 = scalar_lea.sflag [#allocation6], %s2966
          %s2968 = sand.u32 %s112, 1
          %s2969 = smul.addr %s2968, 128
          %s2970 = scalar_lea.vmem [#allocation10], %s2969
          %2971 = dma.done %s2967, 2048
        $region60: #{tpu_custom_call.1} parent=55 // pred_fallthru
          _
      $region56: #{tpu_custom_call.1} parent=5 // pred_fallthru
        _
    $region6: #{tpu_custom_call.1} parent=1 // loop_footer
      %s20 = sadd.s32 1, %s16
    $region7: #{tpu_custom_call.1} parent=1 // loop_footer_branch
      %15 = sbr.rel target = $region3
    $region8: #{tpu_custom_call.1} parent=1 // loop_exit
      _
    %2972 = vsyncpa [#allocation5], 1
    %s2973 = scalar_lea.sflag [#allocation5], 1
    %2974 = vsyncpa %s2973, 1
    %2975 = vsyncpa [#allocation8], 1
    %2976 = vsyncpa [#allocation6], 1
    %s2977 = scalar_lea.sflag [#allocation6], 1
    %2978 = vsyncpa %s2977, 1

</llo_original>
